<compile_context>
chip_gen: v7x
topology: tpu7x:2x2x1
jax: 0.10.0
libtpu: 0.0.40
codegen_flags: <defaults>
</compile_context>

<pallas_src>
import functools

import jax
import jax.numpy as jnp
from jax import lax
from jax.experimental import pallas as pl
from jax.experimental.pallas import tpu as pltpu

KH = KW = 3   # 3x3 conv
LANES = 128   # TPU lane width


def _round_up(x, m):
    return (x + m - 1) // m * m


def _pick_row_block(H, W, target_rows=128):
    """Smallest divisor R of H with R*W >= target_rows (M of each MXU dot)."""
    divisors = [d for d in range(1, H + 1) if H % d == 0]
    cands = [d for d in divisors if d * W >= target_rows]
    return min(cands) if cands else H


def _dense_layer_kernel(x_ref, w_ref, b_ref, scale_ref, shift_ref, o_ref, a_pad_ref,
                        *, H, W, Cin, Cout_p, R, mxu_dtype):
    # x_ref:     (1, H, W, Cin)        one image (NHWC), f32
    # w_ref:     (KH*KW*Cin, Cout_p)   conv taps stacked on the K axis, mxu_dtype
    # b_ref:     (1, Cout_p)           conv bias (zero-padded), f32
    # scale_ref: (1, Cin)              gamma / sqrt(running_var + eps)
    # shift_ref: (1, Cin)              beta - running_mean * scale
    # o_ref:     (1, H, W, Cout_p)     f32 output, Cout padded to the lane width
    # a_pad_ref: (H+2, W+2, Cin)       VMEM scratch: zero-padded BN+ReLU activations

    # Fused BatchNorm (inference affine) + ReLU on the VPU.
    a = jnp.maximum(x_ref[0] * scale_ref[...] + shift_ref[...], 0.0)

    # Zero only the 1-element halo border (not the whole slab).  Done every grid step so
    # the scratch has no cross-step dependence (safe under "parallel" batch sharding).
    a_pad_ref[0] = jnp.zeros((W + 2, Cin), jnp.float32)
    a_pad_ref[H + 1] = jnp.zeros((W + 2, Cin), jnp.float32)
    a_pad_ref[:, 0:1, :] = jnp.zeros((H + 2, 1, Cin), jnp.float32)
    a_pad_ref[:, W + 1:W + 2, :] = jnp.zeros((H + 2, 1, Cin), jnp.float32)
    a_pad_ref[1:H + 1, 1:W + 1, :] = a

    w = w_ref[...]       # (KH*KW*Cin, Cout_p), mxu_dtype
    bias = b_ref[...]    # (1, Cout_p), f32

    # Row-blocked im2col conv: one (R*W, 9*Cin) @ (9*Cin, Cout_p) MXU dot per block,
    # f32 accumulation, lane-dense whole-row-block store.
    num_blocks = H // R
    for t in range(num_blocks):                   # small, static trip count
        h0 = t * R
        rows = a_pad_ref[h0:h0 + R + 2]           # (R+2, W+2, Cin), includes halo
        taps = [rows[kh:kh + R, kw:kw + W, :]     # each (R, W, Cin)
                for kh in range(KH) for kw in range(KW)]
        patch = jnp.concatenate(taps, axis=-1)    # (R, W, KH*KW*Cin)
        patch = patch.reshape(R * W, KH * KW * Cin).astype(mxu_dtype)
        acc = jnp.dot(patch, w, preferred_element_type=jnp.float32) + bias
        o_ref[0, h0:h0 + R] = acc.reshape(R, W, Cout_p).astype(o_ref.dtype)


def dense_layer_forward(x_nchw, params, eps=1e-5, mxu_dtype=jnp.bfloat16):
    """Pallas implementation of DenseLayer.forward (eval mode). Input/output: NCHW."""
    gamma = params["gamma"]
    beta = params["beta"]
    running_mean = params["running_mean"]
    running_var = params["running_var"]
    conv_w = params["conv_w"]   # (Cout, Cin, 3, 3), PyTorch OIHW
    conv_b = params["conv_b"]   # (Cout,)

    N, Cin, H, W = x_nchw.shape
    Cout = conv_w.shape[0]
    Cout_p = _round_up(Cout, LANES)       # lane-dense output stores

    # Fold BatchNorm (inference) into per-channel scale/shift (glue, not hot path).
    scale = (gamma / jnp.sqrt(running_var + eps)).astype(jnp.float32)   # (Cin,)
    shift = (beta - running_mean * scale).astype(jnp.float32)           # (Cin,)

    x_nhwc = jnp.transpose(x_nchw, (0, 2, 3, 1)).astype(jnp.float32)

    # OIHW -> (KH*KW*Cin, Cout): K index = (kh*KW + kw)*Cin + cin, matching the
    # in-kernel patch construction.  Zero-pad Cout to the lane width, cast for the MXU.
    w_taps = jnp.transpose(conv_w, (2, 3, 1, 0)).reshape(KH * KW * Cin, Cout)
    w_taps = jnp.pad(w_taps, ((0, 0), (0, Cout_p - Cout))).astype(mxu_dtype)
    b_pad = jnp.pad(conv_b, (0, Cout_p - Cout)).reshape(1, Cout_p).astype(jnp.float32)

    R = _pick_row_block(H, W)             # M = R*W rows per MXU dot (>= 128 if possible)

    kernel = functools.partial(
        _dense_layer_kernel, H=H, W=W, Cin=Cin, Cout_p=Cout_p, R=R, mxu_dtype=mxu_dtype)

    # Explicit scoped-VMEM budget from actual block/scratch sizes (+ headroom for
    # compiler temporaries), clamped to the smallest physical VMEM (v7x: 64 MiB).
    w_itemsize = jnp.dtype(mxu_dtype).itemsize
    est = (2 * H * W * Cin * 4                           # input block, double-buffered
           + 2 * KH * KW * Cin * Cout_p * w_itemsize     # weights
           + 2 * Cout_p * 4 + 4 * Cin * 4                # bias / scale / shift
           + 2 * H * W * Cout_p * 4                      # output block, double-buffered
           + (H + 2) * (W + 2) * Cin * 4)                # padded-activation scratch
    vmem_limit = int(min(max(4 * est + (2 << 20), 16 << 20), 64 << 20))

    out_nhwc = pl.pallas_call(
        kernel,
        out_shape=jax.ShapeDtypeStruct((N, H, W, Cout_p), jnp.float32),
        grid_spec=pltpu.PrefetchScalarGridSpec(
            num_scalar_prefetch=0,
            grid=(N,),
            in_specs=[
                pl.BlockSpec((1, H, W, Cin), lambda n: (n, 0, 0, 0)),
                pl.BlockSpec((KH * KW * Cin, Cout_p), lambda n: (0, 0)),
                pl.BlockSpec((1, Cout_p), lambda n: (0, 0)),
                pl.BlockSpec((1, Cin), lambda n: (0, 0)),
                pl.BlockSpec((1, Cin), lambda n: (0, 0)),
            ],
            out_specs=pl.BlockSpec((1, H, W, Cout_p), lambda n: (n, 0, 0, 0)),
            scratch_shapes=[pltpu.VMEM((H + 2, W + 2, Cin), jnp.float32)],
        ),
        compiler_params=pltpu.CompilerParams(
            dimension_semantics=("parallel",),
            vmem_limit_bytes=vmem_limit),
    )(x_nhwc, w_taps, b_pad, scale.reshape(1, Cin), shift.reshape(1, Cin))

    # Drop the Cout padding and return NCHW.
    return jnp.transpose(out_nhwc[..., :Cout], (0, 3, 1, 2))


def ref_forward(x_nchw, params, eps=1e-5, operand_dtype=jnp.float32):
    """Pure-JAX reference (eval-mode BN + ReLU + 3x3 same conv; dropout = identity).

    operand_dtype rounds the conv operands the same way the kernel's MXU path does, so
    both the f32 and bf16 kernel variants can be checked with tight tolerances.
    """
    scale = params["gamma"] / jnp.sqrt(params["running_var"] + eps)
    shift = params["beta"] - params["running_mean"] * scale
    a = jnp.maximum(
        x_nchw * scale[None, :, None, None] + shift[None, :, None, None], 0.0)
    a = a.astype(operand_dtype).astype(jnp.float32)
    w = params["conv_w"].astype(operand_dtype).astype(jnp.float32)
    y = lax.conv_general_dilated(
        a, w, window_strides=(1, 1), padding=((1, 1), (1, 1)),
        dimension_numbers=("NCHW", "OIHW", "NCHW"))
    return y + params["conv_b"][None, :, None, None]


if __name__ == "__main__":
    key = jax.random.PRNGKey(0)
    k1, k2, k3, k4, k5, k6, k7 = jax.random.split(key, 7)

    N, Cin, Cout, H, W = 2, 4, 8, 16, 16
    x = jax.random.normal(k1, (N, Cin, H, W), jnp.float32)

    params = dict(
        gamma=jax.random.uniform(k2, (Cin,), jnp.float32, 0.5, 1.5),
        beta=0.1 * jax.random.normal(k3, (Cin,), jnp.float32),
        running_mean=0.1 * jax.random.normal(k4, (Cin,), jnp.float32),
        running_var=jax.random.uniform(k5, (Cin,), jnp.float32, 0.5, 1.5),
        conv_w=0.1 * jax.random.normal(k6, (Cout, Cin, KH, KW), jnp.float32),
        conv_b=0.1 * jax.random.normal(k7, (Cout,), jnp.float32),
    )

    # Default (bf16 MXU operands, f32 accumulation) vs. a bf16-rounded reference.
    out_bf16 = jax.block_until_ready(dense_layer_forward(x, params))
    ref_bf16 = jax.block_until_ready(ref_forward(x, params, operand_dtype=jnp.bfloat16))
    assert out_bf16.shape == (N, Cout, H, W), out_bf16.shape
    assert jnp.allclose(out_bf16, ref_bf16, atol=1e-2, rtol=1e-2), \
        float(jnp.max(jnp.abs(out_bf16 - ref_bf16)))

    # Full-f32 MXU path vs. the f32 reference (tight structural check).
    out_f32 = jax.block_until_ready(dense_layer_forward(x, params, mxu_dtype=jnp.float32))
    ref_f32 = jax.block_until_ready(ref_forward(x, params))
    assert out_f32.shape == (N, Cout, H, W), out_f32.shape
    assert jnp.allclose(out_f32, ref_f32, atol=2e-3, rtol=2e-3), \
        float(jnp.max(jnp.abs(out_f32 - ref_f32)))

    print("KERNEL_OK")
</pallas_src>

<mosaic_0001>
module attributes {stable_mosaic.version = 11 : i64} {
  func.func @_dense_layer_kernel(%arg0: i32, %arg1: memref<1x16x16x4xf32, #tpu.memory_space<vmem>>, %arg2: memref<36x128xbf16, #tpu.memory_space<vmem>>, %arg3: memref<1x128xf32, #tpu.memory_space<vmem>>, %arg4: memref<1x4xf32, #tpu.memory_space<vmem>>, %arg5: memref<1x4xf32, #tpu.memory_space<vmem>>, %arg6: memref<1x16x16x128xf32, #tpu.memory_space<vmem>>, %arg7: memref<18x18x4xf32, #tpu.memory_space<vmem>>) attributes {dimension_semantics = [#tpu.dimension_semantics<parallel>], iteration_bounds = array<i64: 2>, scalar_prefetch = 0 : i64, scratch_operands = 1 : i64, tpu.core_type = #tpu.core_type<tc>, window_params = [{transform_indices = @transform_0, window_bounds = array<i64: 1, 16, 16, 4>}, {pipeline_mode = #tpu.pipeline_mode<synchronous>, transform_indices = @transform_1, window_bounds = array<i64: 36, 128>}, {pipeline_mode = #tpu.pipeline_mode<synchronous>, transform_indices = @transform_2, window_bounds = array<i64: 1, 128>}, {pipeline_mode = #tpu.pipeline_mode<synchronous>, transform_indices = @transform_3, window_bounds = array<i64: 1, 4>}, {pipeline_mode = #tpu.pipeline_mode<synchronous>, transform_indices = @transform_4, window_bounds = array<i64: 1, 4>}, {transform_indices = @transform_5, window_bounds = array<i64: 1, 16, 16, 128>}]} {
    %c0 = arith.constant 0 : index
    %c0_0 = arith.constant 0 : index
    %c0_1 = arith.constant 0 : index
    %c0_2 = arith.constant 0 : index
    %0 = vector.load %arg1[%c0, %c0_0, %c0_1, %c0_2] : memref<1x16x16x4xf32, #tpu.memory_space<vmem>>, vector<1x16x16x4xf32>
    %1 = vector.shape_cast %0 : vector<1x16x16x4xf32> to vector<16x16x4xf32>
    %c0_3 = arith.constant 0 : index
    %c0_4 = arith.constant 0 : index
    %2 = vector.load %arg4[%c0_3, %c0_4] : memref<1x4xf32, #tpu.memory_space<vmem>>, vector<1x4xf32>
    %3 = vector.shape_cast %2 : vector<1x4xf32> to vector<1x1x4xf32>
    %4 = vector.broadcast %3 : vector<1x1x4xf32> to vector<16x16x4xf32>
    %5 = arith.mulf %1, %4 : vector<16x16x4xf32>
    %c0_5 = arith.constant 0 : index
    %c0_6 = arith.constant 0 : index
    %6 = vector.load %arg5[%c0_5, %c0_6] : memref<1x4xf32, #tpu.memory_space<vmem>>, vector<1x4xf32>
    %7 = vector.shape_cast %6 : vector<1x4xf32> to vector<1x1x4xf32>
    %8 = vector.broadcast %7 : vector<1x1x4xf32> to vector<16x16x4xf32>
    %9 = arith.addf %5, %8 : vector<16x16x4xf32>
    %cst = arith.constant 0.000000e+00 : f32
    %10 = vector.broadcast %cst : f32 to vector<16x16x4xf32>
    %11 = arith.maximumf %9, %10 : vector<16x16x4xf32>
    %cst_7 = arith.constant 0.000000e+00 : f32
    %12 = vector.broadcast %cst_7 : f32 to vector<18x4xf32>
    %c0_8 = arith.constant 0 : index
    %c0_9 = arith.constant 0 : index
    %c0_10 = arith.constant 0 : index
    %13 = vector.load %arg7[%c0_8, %c0_9, %c0_10] : memref<18x18x4xf32, #tpu.memory_space<vmem>>, vector<1x18x4xf32>
    %14 = vector.shape_cast %13 : vector<1x18x4xf32> to vector<18x4xf32>
    %15 = vector.shape_cast %12 : vector<18x4xf32> to vector<1x18x4xf32>
    tpu.vector_store %arg7[%c0_8, %c0_9, %c0_10], %15 {strides = array<i32>} : memref<18x18x4xf32, #tpu.memory_space<vmem>>, vector<1x18x4xf32>,
    %cst_11 = arith.constant 0.000000e+00 : f32
    %16 = vector.broadcast %cst_11 : f32 to vector<18x4xf32>
    %c17 = arith.constant 17 : index
    %c0_12 = arith.constant 0 : index
    %c0_13 = arith.constant 0 : index
    %17 = vector.load %arg7[%c17, %c0_12, %c0_13] : memref<18x18x4xf32, #tpu.memory_space<vmem>>, vector<1x18x4xf32>
    %18 = vector.shape_cast %17 : vector<1x18x4xf32> to vector<18x4xf32>
    %19 = vector.shape_cast %16 : vector<18x4xf32> to vector<1x18x4xf32>
    tpu.vector_store %arg7[%c17, %c0_12, %c0_13], %19 {strides = array<i32>} : memref<18x18x4xf32, #tpu.memory_space<vmem>>, vector<1x18x4xf32>,
    %cst_14 = arith.constant 0.000000e+00 : f32
    %20 = vector.broadcast %cst_14 : f32 to vector<18x1x4xf32>
    %c0_15 = arith.constant 0 : index
    %c0_16 = arith.constant 0 : index
    %c0_17 = arith.constant 0 : index
    %21 = vector.load %arg7[%c0_15, %c0_16, %c0_17] : memref<18x18x4xf32, #tpu.memory_space<vmem>>, vector<18x1x4xf32>
    tpu.vector_store %arg7[%c0_15, %c0_16, %c0_17], %20 {strides = array<i32>} : memref<18x18x4xf32, #tpu.memory_space<vmem>>, vector<18x1x4xf32>,
    %cst_18 = arith.constant 0.000000e+00 : f32
    %22 = vector.broadcast %cst_18 : f32 to vector<18x1x4xf32>
    %c0_19 = arith.constant 0 : index
    %c17_20 = arith.constant 17 : index
    %c0_21 = arith.constant 0 : index
    %23 = vector.load %arg7[%c0_19, %c17_20, %c0_21] : memref<18x18x4xf32, #tpu.memory_space<vmem>>, vector<18x1x4xf32>
    tpu.vector_store %arg7[%c0_19, %c17_20, %c0_21], %22 {strides = array<i32>} : memref<18x18x4xf32, #tpu.memory_space<vmem>>, vector<18x1x4xf32>,
    %c1 = arith.constant 1 : index
    %c1_22 = arith.constant 1 : index
    %c0_23 = arith.constant 0 : index
    %24 = vector.load %arg7[%c1, %c1_22, %c0_23] : memref<18x18x4xf32, #tpu.memory_space<vmem>>, vector<16x16x4xf32>
    tpu.vector_store %arg7[%c1, %c1_22, %c0_23], %11 {strides = array<i32>} : memref<18x18x4xf32, #tpu.memory_space<vmem>>, vector<16x16x4xf32>,
    %c0_24 = arith.constant 0 : index
    %c0_25 = arith.constant 0 : index
    %25 = vector.load %arg2[%c0_24, %c0_25] : memref<36x128xbf16, #tpu.memory_space<vmem>>, vector<36x128xbf16>
    %c0_26 = arith.constant 0 : index
    %c0_27 = arith.constant 0 : index
    %26 = vector.load %arg3[%c0_26, %c0_27] : memref<1x128xf32, #tpu.memory_space<vmem>>, vector<1x128xf32>
    %c0_28 = arith.constant 0 : index
    %c0_29 = arith.constant 0 : index
    %c0_30 = arith.constant 0 : index
    %27 = vector.load %arg7[%c0_28, %c0_29, %c0_30] : memref<18x18x4xf32, #tpu.memory_space<vmem>>, vector<10x18x4xf32>
    %28 = vector.extract_strided_slice %27 {offsets = [0, 0, 0], sizes = [8, 16, 4], strides = [1, 1, 1]} : vector<10x18x4xf32> to vector<8x16x4xf32>
    %29 = vector.extract_strided_slice %27 {offsets = [0, 1, 0], sizes = [8, 16, 4], strides = [1, 1, 1]} : vector<10x18x4xf32> to vector<8x16x4xf32>
    %30 = vector.extract_strided_slice %27 {offsets = [0, 2, 0], sizes = [8, 16, 4], strides = [1, 1, 1]} : vector<10x18x4xf32> to vector<8x16x4xf32>
    %31 = vector.extract_strided_slice %27 {offsets = [1, 0, 0], sizes = [8, 16, 4], strides = [1, 1, 1]} : vector<10x18x4xf32> to vector<8x16x4xf32>
    %32 = vector.extract_strided_slice %27 {offsets = [1, 1, 0], sizes = [8, 16, 4], strides = [1, 1, 1]} : vector<10x18x4xf32> to vector<8x16x4xf32>
    %33 = vector.extract_strided_slice %27 {offsets = [1, 2, 0], sizes = [8, 16, 4], strides = [1, 1, 1]} : vector<10x18x4xf32> to vector<8x16x4xf32>
    %34 = vector.extract_strided_slice %27 {offsets = [2, 0, 0], sizes = [8, 16, 4], strides = [1, 1, 1]} : vector<10x18x4xf32> to vector<8x16x4xf32>
    %35 = vector.extract_strided_slice %27 {offsets = [2, 1, 0], sizes = [8, 16, 4], strides = [1, 1, 1]} : vector<10x18x4xf32> to vector<8x16x4xf32>
    %36 = vector.extract_strided_slice %27 {offsets = [2, 2, 0], sizes = [8, 16, 4], strides = [1, 1, 1]} : vector<10x18x4xf32> to vector<8x16x4xf32>
    %37 = tpu.concatenate %28, %29, %30, %31, %32, %33, %34, %35, %36 in 2 : vector<8x16x4xf32>, vector<8x16x4xf32>, vector<8x16x4xf32>, vector<8x16x4xf32>, vector<8x16x4xf32>, vector<8x16x4xf32>, vector<8x16x4xf32>, vector<8x16x4xf32>, vector<8x16x4xf32> -> vector<8x16x36xf32>
    %38 = vector.shape_cast %37 : vector<8x16x36xf32> to vector<128x36xf32>
    %39 = arith.truncf %38 : vector<128x36xf32> to vector<128x36xbf16>
    %cst_31 = arith.constant dense<0.000000e+00> : vector<128x128xf32>
    %40 = tpu.matmul %39, %25, %cst_31 {dimension_numbers = #tpu.dot_dimension_numbers<[1], [0], [0], [1], [0, 0, 1, 1], [], []>} : vector<128x36xbf16>, vector<36x128xbf16>, vector<128x128xf32> -> vector<128x128xf32>
    %41 = vector.broadcast %26 : vector<1x128xf32> to vector<128x128xf32>
    %42 = arith.addf %40, %41 : vector<128x128xf32>
    %43 = vector.shape_cast %42 : vector<128x128xf32> to vector<8x16x128xf32>
    %c0_32 = arith.constant 0 : index
    %c0_33 = arith.constant 0 : index
    %c0_34 = arith.constant 0 : index
    %c0_35 = arith.constant 0 : index
    %44 = vector.load %arg6[%c0_32, %c0_33, %c0_34, %c0_35] : memref<1x16x16x128xf32, #tpu.memory_space<vmem>>, vector<1x8x16x128xf32>
    %45 = vector.shape_cast %44 : vector<1x8x16x128xf32> to vector<8x16x128xf32>
    %46 = vector.shape_cast %43 : vector<8x16x128xf32> to vector<1x8x16x128xf32>
    tpu.vector_store %arg6[%c0_32, %c0_33, %c0_34, %c0_35], %46 {strides = array<i32>} : memref<1x16x16x128xf32, #tpu.memory_space<vmem>>, vector<1x8x16x128xf32>,
    %c8 = arith.constant 8 : index
    %c0_36 = arith.constant 0 : index
    %c0_37 = arith.constant 0 : index
    %47 = vector.load %arg7[%c8, %c0_36, %c0_37] : memref<18x18x4xf32, #tpu.memory_space<vmem>>, vector<10x18x4xf32>
    %48 = vector.extract_strided_slice %47 {offsets = [0, 0, 0], sizes = [8, 16, 4], strides = [1, 1, 1]} : vector<10x18x4xf32> to vector<8x16x4xf32>
    %49 = vector.extract_strided_slice %47 {offsets = [0, 1, 0], sizes = [8, 16, 4], strides = [1, 1, 1]} : vector<10x18x4xf32> to vector<8x16x4xf32>
    %50 = vector.extract_strided_slice %47 {offsets = [0, 2, 0], sizes = [8, 16, 4], strides = [1, 1, 1]} : vector<10x18x4xf32> to vector<8x16x4xf32>
    %51 = vector.extract_strided_slice %47 {offsets = [1, 0, 0], sizes = [8, 16, 4], strides = [1, 1, 1]} : vector<10x18x4xf32> to vector<8x16x4xf32>
    %52 = vector.extract_strided_slice %47 {offsets = [1, 1, 0], sizes = [8, 16, 4], strides = [1, 1, 1]} : vector<10x18x4xf32> to vector<8x16x4xf32>
    %53 = vector.extract_strided_slice %47 {offsets = [1, 2, 0], sizes = [8, 16, 4], strides = [1, 1, 1]} : vector<10x18x4xf32> to vector<8x16x4xf32>
    %54 = vector.extract_strided_slice %47 {offsets = [2, 0, 0], sizes = [8, 16, 4], strides = [1, 1, 1]} : vector<10x18x4xf32> to vector<8x16x4xf32>
    %55 = vector.extract_strided_slice %47 {offsets = [2, 1, 0], sizes = [8, 16, 4], strides = [1, 1, 1]} : vector<10x18x4xf32> to vector<8x16x4xf32>
    %56 = vector.extract_strided_slice %47 {offsets = [2, 2, 0], sizes = [8, 16, 4], strides = [1, 1, 1]} : vector<10x18x4xf32> to vector<8x16x4xf32>
    %57 = tpu.concatenate %48, %49, %50, %51, %52, %53, %54, %55, %56 in 2 : vector<8x16x4xf32>, vector<8x16x4xf32>, vector<8x16x4xf32>, vector<8x16x4xf32>, vector<8x16x4xf32>, vector<8x16x4xf32>, vector<8x16x4xf32>, vector<8x16x4xf32>, vector<8x16x4xf32> -> vector<8x16x36xf32>
    %58 = vector.shape_cast %57 : vector<8x16x36xf32> to vector<128x36xf32>
    %59 = arith.truncf %58 : vector<128x36xf32> to vector<128x36xbf16>
    %cst_38 = arith.constant dense<0.000000e+00> : vector<128x128xf32>
    %60 = tpu.matmul %59, %25, %cst_38 {dimension_numbers = #tpu.dot_dimension_numbers<[1], [0], [0], [1], [0, 0, 1, 1], [], []>} : vector<128x36xbf16>, vector<36x128xbf16>, vector<128x128xf32> -> vector<128x128xf32>
    %61 = vector.broadcast %26 : vector<1x128xf32> to vector<128x128xf32>
    %62 = arith.addf %60, %61 : vector<128x128xf32>
    %63 = vector.shape_cast %62 : vector<128x128xf32> to vector<8x16x128xf32>
    %c0_39 = arith.constant 0 : index
    %c8_40 = arith.constant 8 : index
    %c0_41 = arith.constant 0 : index
    %c0_42 = arith.constant 0 : index
    %64 = vector.load %arg6[%c0_39, %c8_40, %c0_41, %c0_42] : memref<1x16x16x128xf32, #tpu.memory_space<vmem>>, vector<1x8x16x128xf32>
    %65 = vector.shape_cast %64 : vector<1x8x16x128xf32> to vector<8x16x128xf32>
    %66 = vector.shape_cast %63 : vector<8x16x128xf32> to vector<1x8x16x128xf32>
    tpu.vector_store %arg6[%c0_39, %c8_40, %c0_41, %c0_42], %66 {strides = array<i32>} : memref<1x16x16x128xf32, #tpu.memory_space<vmem>>, vector<1x8x16x128xf32>,
    return
  }
  func.func @transform_0(%arg0: i32) -> (i32, i32, i32, i32) {
    %c0_i32 = arith.constant 0 : i32
    %c0_i32_0 = arith.constant 0 : i32
    %c0_i32_1 = arith.constant 0 : i32
    %c0_i32_2 = arith.constant 0 : i32
    return %arg0, %c0_i32, %c0_i32_0, %c0_i32_1 : i32, i32, i32, i32
  }
  func.func @transform_1(%arg0: i32) -> (i32, i32) {
    %c0_i32 = arith.constant 0 : i32
    %c0_i32_0 = arith.constant 0 : i32
    %c0_i32_1 = arith.constant 0 : i32
    return %c0_i32, %c0_i32_0 : i32, i32
  }
  func.func @transform_2(%arg0: i32) -> (i32, i32) {
    %c0_i32 = arith.constant 0 : i32
    %c0_i32_0 = arith.constant 0 : i32
    %c0_i32_1 = arith.constant 0 : i32
    return %c0_i32, %c0_i32_0 : i32, i32
  }
  func.func @transform_3(%arg0: i32) -> (i32, i32) {
    %c0_i32 = arith.constant 0 : i32
    %c0_i32_0 = arith.constant 0 : i32
    %c0_i32_1 = arith.constant 0 : i32
    return %c0_i32, %c0_i32_0 : i32, i32
  }
  func.func @transform_4(%arg0: i32) -> (i32, i32) {
    %c0_i32 = arith.constant 0 : i32
    %c0_i32_0 = arith.constant 0 : i32
    %c0_i32_1 = arith.constant 0 : i32
    return %c0_i32, %c0_i32_0 : i32, i32
  }
  func.func @transform_5(%arg0: i32) -> (i32, i32, i32, i32) {
    %c0_i32 = arith.constant 0 : i32
    %c0_i32_0 = arith.constant 0 : i32
    %c0_i32_1 = arith.constant 0 : i32
    %c0_i32_2 = arith.constant 0 : i32
    return %arg0, %c0_i32, %c0_i32_0, %c0_i32_1 : i32, i32, i32, i32
  }
}

</mosaic_0001>

<llo_original>
// kernel: tpu_custom_call.1
$region0: #{tpu_custom_call.1}
  #allocation0 [shape = 'u32[]', space=smem, size = 0x4, offset = 0x4, fixed_abs, tag = 'smem constant byte address 0x4 - core index']
  #allocation1 [shape = 'u32[144,128]{1,0:T(1,128)}', space=vmem, size = 0x12000, scoped, tag = 'internal scratch']
  #allocation2 [shape = 'f32[18,18,4]{2,1,0:T(8,128)}', space=vmem, size = 0x36000, scoped, tag = 'scratch operand']
  %s0 = inlined_call_operand.vmem [shape: f32[2,16,16,4], index: 0, kind: input, shape index: {}]
  %s1 = inlined_call_operand.vmem [shape: bf16[36,128], index: 1, kind: input, shape index: {}]
  %s2 = inlined_call_operand.vmem [shape: f32[1,128], index: 2, kind: input, shape index: {}]
  %s3 = inlined_call_operand.vmem [shape: f32[1,4], index: 3, kind: input, shape index: {}]
  %s4 = inlined_call_operand.vmem [shape: f32[1,4], index: 4, kind: input, shape index: {}]
  %s5 = inlined_call_operand.hbm [shape: f32[2,16,16,128], index: 5, kind: output, shape index: {}]
  %s6 = sld [smem:[#allocation0]]
  $region53: #{tpu_custom_call.1} parent=0
    _
  %s8 = ssub.s32 1, %s6
  %s9 = scalar_select 0, %s8, %s6
  $region1: #{tpu_custom_call.1} parent=0
    #allocation3 [shape = 'u8[262144]{0}', space=vmem, size = 0x40000, scoped, tag = 'output window, operand 0']
    #allocation4 [shape = 's32[2]{0}', space=sflag, size = 0x8, scoped, tag = 'scoped memory for tpu_custom_call.1']
    %10 = vsyncpa [#allocation4], 0
    %s11 = scalar_lea.sflag [#allocation4], 1
    %12 = vsyncpa %s11, 0
    loop: start=0, step=1, limit=4
    $region2: #{tpu_custom_call.1} parent=1 // loop_pre_header
      _
    $region3: #{tpu_custom_call.1} parent=1 // loop_header
      %s14 = sphi 0, %s18
      %p15 = scmp.ge.s32.totalorder %s14, 4
      %s24 = sphi 0, %s26
      %s27 = sphi 0, %s24
      %s28 = sphi 0, %s27
      %s44 = sphi 0, %s28
      %s48 = sphi 0, %s48
      %s50 = sphi 0, %s48
      %s51 = sphi 0, %s50
      %s65 = sphi 0, %s51
      %s69 = sphi 0, %s69
      %s71 = sphi 0, %s69
      %s72 = sphi 0, %s71
      %s86 = sphi 0, %s72
      %s90 = sphi 0, %s90
      %s92 = sphi 0, %s90
      %s93 = sphi 0, %s92
      %s107 = sphi 0, %s93
      %s111 = sphi 0, %s111
      %s113 = sphi 0, %s111
      %s114 = sphi 0, %s113
      %s128 = sphi 0, %s114
      %s134 = sphi 0, %s136
      %s137 = sphi 0, %s134
      %s138 = sphi 0, %s137
      %s154 = sphi 0, %s138
    $region4: #{tpu_custom_call.1} parent=1 // loop_header_branch
      %17 = sbr.rel (%p15) target = $region8
    $region5: #{tpu_custom_call.1} parent=1 // loop_body
      %s19 = ssub.s32 %s14, 1
      %s20 = ssub.s32 %s14, 2
      %s21 = sadd.s32 %s14, 1
      %s22 = ssub.s32 %s14, %s21
      %p23 = scmp.eq.s32.totalorder %s22, 0
      %s25 = sadd.s32 %s24, 1
      %s26 = scalar_select %p23, %s24, %s25
      %p29 = pneg %p23
      %p30 = scmp.eq.s32.totalorder %s14, 1
      %p31 = por %p29, %p30
      %p32 = scmp.ne.s32.totalorder %s24, %s27
      %p33 = scmp.eq.s32.totalorder %s14, 0
      %p34 = por %p32, %p33
      %p35 = scmp.ne.s32.totalorder %s24, %s27
      %p36 = scmp.eq.s32.totalorder %s19, 1
      %p37 = por %p35, %p36
      %p38 = scmp.ne.s32.totalorder %s27, %s28
      %p39 = scmp.eq.s32.totalorder %s19, 0
      %p40 = por %p38, %p39
      %p41 = scmp.ne.s32.totalorder %s27, %s28
      %p42 = scmp.eq.s32.totalorder %s20, 1
      %p43 = por %p41, %p42
      %p45 = scmp.ne.s32.totalorder %s28, %s44
      %p46 = scmp.eq.s32.totalorder %s20, 0
      %p47 = por %p45, %p46
      %s49 = sadd.s32 %s48, 1
      %p52 = scmp.eq.s32.totalorder %s14, 1
      %p53 = scmp.ne.s32.totalorder %s48, %s50
      %p54 = scmp.eq.s32.totalorder %s14, 0
      %p55 = por %p53, %p54
      %p56 = scmp.ne.s32.totalorder %s48, %s50
      %p57 = scmp.eq.s32.totalorder %s19, 1
      %p58 = por %p56, %p57
      %p59 = scmp.ne.s32.totalorder %s50, %s51
      %p60 = scmp.eq.s32.totalorder %s19, 0
      %p61 = por %p59, %p60
      %p62 = scmp.ne.s32.totalorder %s50, %s51
      %p63 = scmp.eq.s32.totalorder %s20, 1
      %p64 = por %p62, %p63
      %p66 = scmp.ne.s32.totalorder %s51, %s65
      %p67 = scmp.eq.s32.totalorder %s20, 0
      %p68 = por %p66, %p67
      %s70 = sadd.s32 %s69, 1
      %p73 = scmp.eq.s32.totalorder %s14, 1
      %p74 = scmp.ne.s32.totalorder %s69, %s71
      %p75 = scmp.eq.s32.totalorder %s14, 0
      %p76 = por %p74, %p75
      %p77 = scmp.ne.s32.totalorder %s69, %s71
      %p78 = scmp.eq.s32.totalorder %s19, 1
      %p79 = por %p77, %p78
      %p80 = scmp.ne.s32.totalorder %s71, %s72
      %p81 = scmp.eq.s32.totalorder %s19, 0
      %p82 = por %p80, %p81
      %p83 = scmp.ne.s32.totalorder %s71, %s72
      %p84 = scmp.eq.s32.totalorder %s20, 1
      %p85 = por %p83, %p84
      %p87 = scmp.ne.s32.totalorder %s72, %s86
      %p88 = scmp.eq.s32.totalorder %s20, 0
      %p89 = por %p87, %p88
      %s91 = sadd.s32 %s90, 1
      %p94 = scmp.eq.s32.totalorder %s14, 1
      %p95 = scmp.ne.s32.totalorder %s90, %s92
      %p96 = scmp.eq.s32.totalorder %s14, 0
      %p97 = por %p95, %p96
      %p98 = scmp.ne.s32.totalorder %s90, %s92
      %p99 = scmp.eq.s32.totalorder %s19, 1
      %p100 = por %p98, %p99
      %p101 = scmp.ne.s32.totalorder %s92, %s93
      %p102 = scmp.eq.s32.totalorder %s19, 0
      %p103 = por %p101, %p102
      %p104 = scmp.ne.s32.totalorder %s92, %s93
      %p105 = scmp.eq.s32.totalorder %s20, 1
      %p106 = por %p104, %p105
      %p108 = scmp.ne.s32.totalorder %s93, %s107
      %p109 = scmp.eq.s32.totalorder %s20, 0
      %p110 = por %p108, %p109
      %s112 = sadd.s32 %s111, 1
      %p115 = scmp.eq.s32.totalorder %s14, 1
      %p116 = scmp.ne.s32.totalorder %s111, %s113
      %p117 = scmp.eq.s32.totalorder %s14, 0
      %p118 = por %p116, %p117
      %p119 = scmp.ne.s32.totalorder %s111, %s113
      %p120 = scmp.eq.s32.totalorder %s19, 1
      %p121 = por %p119, %p120
      %p122 = scmp.ne.s32.totalorder %s113, %s114
      %p123 = scmp.eq.s32.totalorder %s19, 0
      %p124 = por %p122, %p123
      %p125 = scmp.ne.s32.totalorder %s113, %s114
      %p126 = scmp.eq.s32.totalorder %s20, 1
      %p127 = por %p125, %p126
      %p129 = scmp.ne.s32.totalorder %s114, %s128
      %p130 = scmp.eq.s32.totalorder %s20, 0
      %p131 = por %p129, %p130
      %s132 = ssub.s32 %s14, %s21
      %p133 = scmp.eq.s32.totalorder %s132, 0
      %s135 = sadd.s32 %s134, 1
      %s136 = scalar_select %p133, %s134, %s135
      %p139 = pneg %p133
      %p140 = scmp.eq.s32.totalorder %s14, 1
      %p141 = por %p139, %p140
      %p142 = scmp.ne.s32.totalorder %s134, %s137
      %p143 = scmp.eq.s32.totalorder %s14, 0
      %p144 = por %p142, %p143
      %p145 = scmp.ne.s32.totalorder %s134, %s137
      %p146 = scmp.eq.s32.totalorder %s19, 1
      %p147 = por %p145, %p146
      %p148 = scmp.ne.s32.totalorder %s137, %s138
      %p149 = scmp.eq.s32.totalorder %s19, 0
      %p150 = por %p148, %p149
      %p151 = scmp.ne.s32.totalorder %s137, %s138
      %p152 = scmp.eq.s32.totalorder %s20, 1
      %p153 = por %p151, %p152
      %p155 = scmp.ne.s32.totalorder %s138, %s154
      %p156 = scmp.eq.s32.totalorder %s20, 0
      %p157 = por %p155, %p156
      %p158 = scmp.le.s32.totalorder 1, %s14
      %p159 = scmp.lt.s32.totalorder %s14, 3
      %p160 = pnand %p158, %p159
      %p161 = pneg %p160
      // Predicated region
      $region9: #{tpu_custom_call.1} parent=5 // pred_check
        _
      $region10: #{tpu_custom_call.1} parent=5 // pred_check_branch
        %163 = sbr.rel (%p160) target = $region12
      $region11: #{tpu_custom_call.1} parent=5 // pred_region
        %s164 = ssub.s32 %s14, 1
        // Predicated region
        $region13: #{tpu_custom_call.1} parent=11 // pred_check
          %p165 = pneg %p61
        $region14: #{tpu_custom_call.1} parent=11 // pred_check_branch
          %167 = sbr.rel (%p165) target = $region16
        $region15: #{tpu_custom_call.1} parent=11 // pred_region
          _
        $region16: #{tpu_custom_call.1} parent=11 // pred_fallthru
          _
        // Predicated region
        $region17: #{tpu_custom_call.1} parent=11 // pred_check
          %p168 = pneg %p82
        $region18: #{tpu_custom_call.1} parent=11 // pred_check_branch
          %170 = sbr.rel (%p168) target = $region20
        $region19: #{tpu_custom_call.1} parent=11 // pred_region
          _
        $region20: #{tpu_custom_call.1} parent=11 // pred_fallthru
          _
        // Predicated region
        $region21: #{tpu_custom_call.1} parent=11 // pred_check
          %p171 = pneg %p103
        $region22: #{tpu_custom_call.1} parent=11 // pred_check_branch
          %173 = sbr.rel (%p171) target = $region24
        $region23: #{tpu_custom_call.1} parent=11 // pred_region
          _
        $region24: #{tpu_custom_call.1} parent=11 // pred_fallthru
          _
        // Predicated region
        $region25: #{tpu_custom_call.1} parent=11 // pred_check
          %p174 = pneg %p124
        $region26: #{tpu_custom_call.1} parent=11 // pred_check_branch
          %176 = sbr.rel (%p174) target = $region28
        $region27: #{tpu_custom_call.1} parent=11 // pred_region
          _
        $region28: #{tpu_custom_call.1} parent=11 // pred_fallthru
          _
      $region12: #{tpu_custom_call.1} parent=5 // pred_fallthru
        _
      %p177 = scmp.lt.s32.totalorder %s14, 2
      // Predicated region
      $region29: #{tpu_custom_call.1} parent=5 // pred_check
        %p178 = pneg %p177
      $region30: #{tpu_custom_call.1} parent=5 // pred_check_branch
        %180 = sbr.rel (%p178) target = $region32
      $region31: #{tpu_custom_call.1} parent=5 // pred_region
        // Predicated region
        $region33: #{tpu_custom_call.1} parent=31 // pred_check
          %p181 = pneg %p34
        $region34: #{tpu_custom_call.1} parent=31 // pred_check_branch
          %183 = sbr.rel (%p181) target = $region36
        $region35: #{tpu_custom_call.1} parent=31 // pred_region
          %p184 = scmp.lt.s32.totalorder %s14, 1
          %s185 = scalar_select %p184, %s14, 1
          %s186 = smul.addr %s185, 32
          %s187 = smul.addr %s186, 8
          %s188 = scalar_lea.vmem %s0, %s187
        $region36: #{tpu_custom_call.1} parent=31 // pred_fallthru
          _
      $region32: #{tpu_custom_call.1} parent=5 // pred_fallthru
        _
      %p189 = scmp.le.s32.totalorder 1, %s14
      %p190 = scmp.lt.s32.totalorder %s14, 3
      %p191 = pnand %p189, %p190
      %p192 = pneg %p191
      // Predicated region
      $region37: #{tpu_custom_call.1} parent=5 // pred_check
        _
      $region38: #{tpu_custom_call.1} parent=5 // pred_check_branch
        %194 = sbr.rel (%p191) target = $region40
      $region39: #{tpu_custom_call.1} parent=5 // pred_region
        %s195 = ssub.s32 %s14, 1
        %p196 = scmp.lt.s32.totalorder %s19, 1
        %s197 = scalar_select %p196, %s19, 1
        %s198 = smul.addr %s197, 32
        %s199 = smul.addr %s198, 8
        %s200 = scalar_lea.vmem %s0, %s199
        %p201 = pneg %p40
        %p202 = pneg %p37
        %p203 = pneg %p61
        %p204 = pneg %p58
        %p205 = pneg %p82
        %p206 = pneg %p79
        %p207 = pneg %p103
        %p208 = pneg %p100
        %p209 = pneg %p124
        %p210 = pneg %p121
        %p211 = pneg %p150
        %p212 = pneg %p147
        %s213 = sand.u32 %s137, 1
        %s214 = scalar_lea.sflag [#allocation4], %s213
        %s215 = sand.u32 %s137, 1
        %s216 = smul.addr %s215, 256
        %s217 = scalar_lea.vmem [#allocation3], %s216
        %p218 = scmp.lt.s32.totalorder %s19, 1
        %s219 = scalar_select %p218, %s19, 1
        %s220 = smul.addr %s219, 32
        %s221 = smul.addr %s220, 8
        %s222 = scalar_lea.vmem %s0, %s221
        %v224 = vld [vmem:[%s222] sm:$0xff]
        %v225 = vld [vmem:[%s222 + $0x8] sm:$0xff]
        %v226 = vld [vmem:[%s222 + $0x10] sm:$0xff]
        %v227 = vld [vmem:[%s222 + $0x18] sm:$0xff]
        %v228 = vld [vmem:[%s222 + $0x20] sm:$0xff]
        %v229 = vld [vmem:[%s222 + $0x28] sm:$0xff]
        %v230 = vld [vmem:[%s222 + $0x30] sm:$0xff]
        %v231 = vld [vmem:[%s222 + $0x38] sm:$0xff]
        %v232 = vld [vmem:[%s222 + $0x40] sm:$0xff]
        %v233 = vld [vmem:[%s222 + $0x48] sm:$0xff]
        %v234 = vld [vmem:[%s222 + $0x50] sm:$0xff]
        %v235 = vld [vmem:[%s222 + $0x58] sm:$0xff]
        %v236 = vld [vmem:[%s222 + $0x60] sm:$0xff]
        %v237 = vld [vmem:[%s222 + $0x68] sm:$0xff]
        %v238 = vld [vmem:[%s222 + $0x70] sm:$0xff]
        %v239 = vld [vmem:[%s222 + $0x78] sm:$0xff]
        %v240 = vld [vmem:[%s222 + $0x80] sm:$0xff]
        %v241 = vld [vmem:[%s222 + $0x88] sm:$0xff]
        %v242 = vld [vmem:[%s222 + $0x90] sm:$0xff]
        %v243 = vld [vmem:[%s222 + $0x98] sm:$0xff]
        %v244 = vld [vmem:[%s222 + $0xa0] sm:$0xff]
        %v245 = vld [vmem:[%s222 + $0xa8] sm:$0xff]
        %v246 = vld [vmem:[%s222 + $0xb0] sm:$0xff]
        %v247 = vld [vmem:[%s222 + $0xb8] sm:$0xff]
        %v248 = vld [vmem:[%s222 + $0xc0] sm:$0xff]
        %v249 = vld [vmem:[%s222 + $0xc8] sm:$0xff]
        %v250 = vld [vmem:[%s222 + $0xd0] sm:$0xff]
        %v251 = vld [vmem:[%s222 + $0xd8] sm:$0xff]
        %v252 = vld [vmem:[%s222 + $0xe0] sm:$0xff]
        %v253 = vld [vmem:[%s222 + $0xe8] sm:$0xff]
        %v254 = vld [vmem:[%s222 + $0xf0] sm:$0xff]
        %v255 = vld [vmem:[%s222 + $0xf8] sm:$0xff]
        %v256 = vld [vmem:[%s3] sm:$0x1]
        %v258 = vlaneseq
        %v259 = vshrl.u32 %v258, 7
        %v260 = vsub.s32 0, %v259
        %v261 = vrot.slane %v256, %v260
        %v263 = vmul.f32 %v224, %v261
        %v264 = vmul.f32 %v225, %v261
        %v265 = vmul.f32 %v226, %v261
        %v266 = vmul.f32 %v227, %v261
        %v267 = vmul.f32 %v228, %v261
        %v268 = vmul.f32 %v229, %v261
        %v269 = vmul.f32 %v230, %v261
        %v270 = vmul.f32 %v231, %v261
        %v271 = vmul.f32 %v232, %v261
        %v272 = vmul.f32 %v233, %v261
        %v273 = vmul.f32 %v234, %v261
        %v274 = vmul.f32 %v235, %v261
        %v275 = vmul.f32 %v236, %v261
        %v276 = vmul.f32 %v237, %v261
        %v277 = vmul.f32 %v238, %v261
        %v278 = vmul.f32 %v239, %v261
        %v279 = vmul.f32 %v240, %v261
        %v280 = vmul.f32 %v241, %v261
        %v281 = vmul.f32 %v242, %v261
        %v282 = vmul.f32 %v243, %v261
        %v283 = vmul.f32 %v244, %v261
        %v284 = vmul.f32 %v245, %v261
        %v285 = vmul.f32 %v246, %v261
        %v286 = vmul.f32 %v247, %v261
        %v287 = vmul.f32 %v248, %v261
        %v288 = vmul.f32 %v249, %v261
        %v289 = vmul.f32 %v250, %v261
        %v290 = vmul.f32 %v251, %v261
        %v291 = vmul.f32 %v252, %v261
        %v292 = vmul.f32 %v253, %v261
        %v293 = vmul.f32 %v254, %v261
        %v294 = vmul.f32 %v255, %v261
        %v295 = vld [vmem:[%s4] sm:$0x1]
        %v297 = vlaneseq
        %v298 = vshrl.u32 %v297, 7
        %v299 = vsub.s32 0, %v298
        %v300 = vrot.slane %v295, %v299
        %v302 = vadd.f32 %v263, %v300
        %v303 = vadd.f32 %v264, %v300
        %v304 = vadd.f32 %v265, %v300
        %v305 = vadd.f32 %v266, %v300
        %v306 = vadd.f32 %v267, %v300
        %v307 = vadd.f32 %v268, %v300
        %v308 = vadd.f32 %v269, %v300
        %v309 = vadd.f32 %v270, %v300
        %v310 = vadd.f32 %v271, %v300
        %v311 = vadd.f32 %v272, %v300
        %v312 = vadd.f32 %v273, %v300
        %v313 = vadd.f32 %v274, %v300
        %v314 = vadd.f32 %v275, %v300
        %v315 = vadd.f32 %v276, %v300
        %v316 = vadd.f32 %v277, %v300
        %v317 = vadd.f32 %v278, %v300
        %v318 = vadd.f32 %v279, %v300
        %v319 = vadd.f32 %v280, %v300
        %v320 = vadd.f32 %v281, %v300
        %v321 = vadd.f32 %v282, %v300
        %v322 = vadd.f32 %v283, %v300
        %v323 = vadd.f32 %v284, %v300
        %v324 = vadd.f32 %v285, %v300
        %v325 = vadd.f32 %v286, %v300
        %v326 = vadd.f32 %v287, %v300
        %v327 = vadd.f32 %v288, %v300
        %v328 = vadd.f32 %v289, %v300
        %v329 = vadd.f32 %v290, %v300
        %v330 = vadd.f32 %v291, %v300
        %v331 = vadd.f32 %v292, %v300
        %v332 = vadd.f32 %v293, %v300
        %v333 = vadd.f32 %v294, %v300
        %v334 = vmax.f32 %v302, 0.0
        %v335 = vmax.f32 %v303, 0.0
        %v336 = vmax.f32 %v304, 0.0
        %v337 = vmax.f32 %v305, 0.0
        %v338 = vmax.f32 %v306, 0.0
        %v339 = vmax.f32 %v307, 0.0
        %v340 = vmax.f32 %v308, 0.0
        %v341 = vmax.f32 %v309, 0.0
        %v342 = vmax.f32 %v310, 0.0
        %v343 = vmax.f32 %v311, 0.0
        %v344 = vmax.f32 %v312, 0.0
        %v345 = vmax.f32 %v313, 0.0
        %v346 = vmax.f32 %v314, 0.0
        %v347 = vmax.f32 %v315, 0.0
        %v348 = vmax.f32 %v316, 0.0
        %v349 = vmax.f32 %v317, 0.0
        %v350 = vmax.f32 %v318, 0.0
        %v351 = vmax.f32 %v319, 0.0
        %v352 = vmax.f32 %v320, 0.0
        %v353 = vmax.f32 %v321, 0.0
        %v354 = vmax.f32 %v322, 0.0
        %v355 = vmax.f32 %v323, 0.0
        %v356 = vmax.f32 %v324, 0.0
        %v357 = vmax.f32 %v325, 0.0
        %v358 = vmax.f32 %v326, 0.0
        %v359 = vmax.f32 %v327, 0.0
        %v360 = vmax.f32 %v328, 0.0
        %v361 = vmax.f32 %v329, 0.0
        %v362 = vmax.f32 %v330, 0.0
        %v363 = vmax.f32 %v331, 0.0
        %v364 = vmax.f32 %v332, 0.0
        %v365 = vmax.f32 %v333, 0.0
        %vm366 = vcmask 31744
        %367 = vst.msk [vmem:[#allocation2] sm:$0xff] %vm366, 0.0
        %368 = vst.msk [vmem:[#allocation2 + $0x8] sm:$0xff] %vm366, 0.0
        %vm369 = vcmask 25600
        %370 = vst.msk [vmem:[#allocation2 + $0x10] sm:$0x3] %vm369, 0.0
        %s371 = scalar_lea.vmem [#allocation2], 408
        %372 = vst.msk [vmem:[%s371] sm:$0xff] %vm366, 0.0
        %373 = vst.msk [vmem:[%s371 + $0x8] sm:$0xff] %vm366, 0.0
        %374 = vst.msk [vmem:[%s371 + $0x10] sm:$0x3] %vm369, 0.0
        %vm375 = vcmask 24576
        %376 = vst.msk [vmem:[#allocation2] sm:$0x1] %vm375, 0.0
        %377 = vst.msk [vmem:[#allocation2 + $0x18] sm:$0x1] %vm375, 0.0
        %378 = vst.msk [vmem:[#allocation2 + $0x30] sm:$0x1] %vm375, 0.0
        %379 = vst.msk [vmem:[#allocation2 + $0x48] sm:$0x1] %vm375, 0.0
        %380 = vst.msk [vmem:[#allocation2 + $0x60] sm:$0x1] %vm375, 0.0
        %381 = vst.msk [vmem:[#allocation2 + $0x78] sm:$0x1] %vm375, 0.0
        %382 = vst.msk [vmem:[#allocation2 + $0x90] sm:$0x1] %vm375, 0.0
        %383 = vst.msk [vmem:[#allocation2 + $0xa8] sm:$0x1] %vm375, 0.0
        %384 = vst.msk [vmem:[#allocation2 + $0xc0] sm:$0x1] %vm375, 0.0
        %385 = vst.msk [vmem:[#allocation2 + $0xd8] sm:$0x1] %vm375, 0.0
        %386 = vst.msk [vmem:[#allocation2 + $0xf0] sm:$0x1] %vm375, 0.0
        %387 = vst.msk [vmem:[#allocation2 + $0x108] sm:$0x1] %vm375, 0.0
        %388 = vst.msk [vmem:[#allocation2 + $0x120] sm:$0x1] %vm375, 0.0
        %389 = vst.msk [vmem:[#allocation2 + $0x138] sm:$0x1] %vm375, 0.0
        %390 = vst.msk [vmem:[#allocation2 + $0x150] sm:$0x1] %vm375, 0.0
        %391 = vst.msk [vmem:[#allocation2 + $0x168] sm:$0x1] %vm375, 0.0
        %392 = vst.msk [vmem:[#allocation2 + $0x180] sm:$0x1] %vm375, 0.0
        %393 = vst.msk [vmem:[#allocation2 + $0x198] sm:$0x1] %vm375, 0.0
        %394 = vst.msk [vmem:[#allocation2 + $0x11] sm:$0x1] %vm375, 0.0
        %395 = vst.msk [vmem:[#allocation2 + $0x29] sm:$0x1] %vm375, 0.0
        %396 = vst.msk [vmem:[#allocation2 + $0x41] sm:$0x1] %vm375, 0.0
        %397 = vst.msk [vmem:[#allocation2 + $0x59] sm:$0x1] %vm375, 0.0
        %398 = vst.msk [vmem:[#allocation2 + $0x71] sm:$0x1] %vm375, 0.0
        %399 = vst.msk [vmem:[#allocation2 + $0x89] sm:$0x1] %vm375, 0.0
        %400 = vst.msk [vmem:[#allocation2 + $0xa1] sm:$0x1] %vm375, 0.0
        %401 = vst.msk [vmem:[#allocation2 + $0xb9] sm:$0x1] %vm375, 0.0
        %402 = vst.msk [vmem:[#allocation2 + $0xd1] sm:$0x1] %vm375, 0.0
        %403 = vst.msk [vmem:[#allocation2 + $0xe9] sm:$0x1] %vm375, 0.0
        %404 = vst.msk [vmem:[#allocation2 + $0x101] sm:$0x1] %vm375, 0.0
        %405 = vst.msk [vmem:[#allocation2 + $0x119] sm:$0x1] %vm375, 0.0
        %406 = vst.msk [vmem:[#allocation2 + $0x131] sm:$0x1] %vm375, 0.0
        %407 = vst.msk [vmem:[#allocation2 + $0x149] sm:$0x1] %vm375, 0.0
        %408 = vst.msk [vmem:[#allocation2 + $0x161] sm:$0x1] %vm375, 0.0
        %409 = vst.msk [vmem:[#allocation2 + $0x179] sm:$0x1] %vm375, 0.0
        %410 = vst.msk [vmem:[#allocation2 + $0x191] sm:$0x1] %vm375, 0.0
        %411 = vst.msk [vmem:[#allocation2 + $0x1a9] sm:$0x1] %vm375, 0.0
        %s412 = scalar_lea.vmem [#allocation2], 24
        %413 = vst.msk [vmem:[%s412 + $0x1] sm:$0xff] %vm366, %v334
        %414 = vst.msk [vmem:[%s412 + $0x9] sm:$0xff] %vm366, %v335
        %415 = vst.msk [vmem:[%s412 + $0x19] sm:$0xff] %vm366, %v336
        %416 = vst.msk [vmem:[%s412 + $0x21] sm:$0xff] %vm366, %v337
        %417 = vst.msk [vmem:[%s412 + $0x31] sm:$0xff] %vm366, %v338
        %418 = vst.msk [vmem:[%s412 + $0x39] sm:$0xff] %vm366, %v339
        %419 = vst.msk [vmem:[%s412 + $0x49] sm:$0xff] %vm366, %v340
        %420 = vst.msk [vmem:[%s412 + $0x51] sm:$0xff] %vm366, %v341
        %421 = vst.msk [vmem:[%s412 + $0x61] sm:$0xff] %vm366, %v342
        %422 = vst.msk [vmem:[%s412 + $0x69] sm:$0xff] %vm366, %v343
        %423 = vst.msk [vmem:[%s412 + $0x79] sm:$0xff] %vm366, %v344
        %424 = vst.msk [vmem:[%s412 + $0x81] sm:$0xff] %vm366, %v345
        %425 = vst.msk [vmem:[%s412 + $0x91] sm:$0xff] %vm366, %v346
        %426 = vst.msk [vmem:[%s412 + $0x99] sm:$0xff] %vm366, %v347
        %427 = vst.msk [vmem:[%s412 + $0xa9] sm:$0xff] %vm366, %v348
        %428 = vst.msk [vmem:[%s412 + $0xb1] sm:$0xff] %vm366, %v349
        %429 = vst.msk [vmem:[%s412 + $0xc1] sm:$0xff] %vm366, %v350
        %430 = vst.msk [vmem:[%s412 + $0xc9] sm:$0xff] %vm366, %v351
        %431 = vst.msk [vmem:[%s412 + $0xd9] sm:$0xff] %vm366, %v352
        %432 = vst.msk [vmem:[%s412 + $0xe1] sm:$0xff] %vm366, %v353
        %433 = vst.msk [vmem:[%s412 + $0xf1] sm:$0xff] %vm366, %v354
        %434 = vst.msk [vmem:[%s412 + $0xf9] sm:$0xff] %vm366, %v355
        %435 = vst.msk [vmem:[%s412 + $0x109] sm:$0xff] %vm366, %v356
        %436 = vst.msk [vmem:[%s412 + $0x111] sm:$0xff] %vm366, %v357
        %437 = vst.msk [vmem:[%s412 + $0x121] sm:$0xff] %vm366, %v358
        %438 = vst.msk [vmem:[%s412 + $0x129] sm:$0xff] %vm366, %v359
        %439 = vst.msk [vmem:[%s412 + $0x139] sm:$0xff] %vm366, %v360
        %440 = vst.msk [vmem:[%s412 + $0x141] sm:$0xff] %vm366, %v361
        %441 = vst.msk [vmem:[%s412 + $0x151] sm:$0xff] %vm366, %v362
        %442 = vst.msk [vmem:[%s412 + $0x159] sm:$0xff] %vm366, %v363
        %443 = vst.msk [vmem:[%s412 + $0x169] sm:$0xff] %vm366, %v364
        %444 = vst.msk [vmem:[%s412 + $0x171] sm:$0xff] %vm366, %v365
        %v445 = vld [vmem:[%s1] sm:$0xf]
        %v446 = vld [vmem:[%s1 + $0x4] sm:$0xf]
        %v447 = vld [vmem:[%s1 + $0x8] sm:$0xf]
        %v448 = vld [vmem:[%s1 + $0xc] sm:$0xf]
        %v449 = vld [vmem:[%s1 + $0x10] sm:$0x3]
        %v450 = vld [vmem:[%s2] sm:$0x1]
        %v451 = vld [vmem:[#allocation2] sm:$0xff]
        %v452 = vld [vmem:[#allocation2 + $0x8] sm:$0xff]
        %v453 = vld [vmem:[#allocation2 + $0x10] sm:$0x3]
        %v454 = vld [vmem:[#allocation2 + $0x18] sm:$0xff]
        %v455 = vld [vmem:[#allocation2 + $0x20] sm:$0xff]
        %v456 = vld [vmem:[#allocation2 + $0x28] sm:$0x3]
        %v457 = vld [vmem:[#allocation2 + $0x30] sm:$0xff]
        %v458 = vld [vmem:[#allocation2 + $0x38] sm:$0xff]
        %v459 = vld [vmem:[#allocation2 + $0x40] sm:$0x3]
        %v460 = vld [vmem:[#allocation2 + $0x48] sm:$0xff]
        %v461 = vld [vmem:[#allocation2 + $0x50] sm:$0xff]
        %v462 = vld [vmem:[#allocation2 + $0x58] sm:$0x3]
        %v463 = vld [vmem:[#allocation2 + $0x60] sm:$0xff]
        %v464 = vld [vmem:[#allocation2 + $0x68] sm:$0xff]
        %v465 = vld [vmem:[#allocation2 + $0x70] sm:$0x3]
        %v466 = vld [vmem:[#allocation2 + $0x78] sm:$0xff]
        %v467 = vld [vmem:[#allocation2 + $0x80] sm:$0xff]
        %v468 = vld [vmem:[#allocation2 + $0x88] sm:$0x3]
        %v469 = vld [vmem:[#allocation2 + $0x90] sm:$0xff]
        %v470 = vld [vmem:[#allocation2 + $0x98] sm:$0xff]
        %v471 = vld [vmem:[#allocation2 + $0xa0] sm:$0x3]
        %v472 = vld [vmem:[#allocation2 + $0xa8] sm:$0xff]
        %v473 = vld [vmem:[#allocation2 + $0xb0] sm:$0xff]
        %v474 = vld [vmem:[#allocation2 + $0xb8] sm:$0x3]
        %v475 = vld [vmem:[#allocation2 + $0xc0] sm:$0xff]
        %v476 = vld [vmem:[#allocation2 + $0xc8] sm:$0xff]
        %v477 = vld [vmem:[#allocation2 + $0xd0] sm:$0x3]
        %v478 = vld [vmem:[#allocation2 + $0xd8] sm:$0xff]
        %v479 = vld [vmem:[#allocation2 + $0xe0] sm:$0xff]
        %v480 = vld [vmem:[#allocation2 + $0xe8] sm:$0x3]
        %vm505 = vcmask 1046528
        %v506 = vrot.slane %v451, 1
        %v507 = vrot.slane %v452, 1
        %v508 = vsel %vm505, %v506, %v507
        %v509 = vrot.slane %v453, 1
        %v510 = vsel %vm505, %v507, %v509
        %v511 = vrot.slane %v454, 1
        %v512 = vrot.slane %v455, 1
        %v513 = vsel %vm505, %v511, %v512
        %v514 = vrot.slane %v456, 1
        %v515 = vsel %vm505, %v512, %v514
        %v516 = vrot.slane %v457, 1
        %v517 = vrot.slane %v458, 1
        %v518 = vsel %vm505, %v516, %v517
        %v519 = vrot.slane %v459, 1
        %v520 = vsel %vm505, %v517, %v519
        %v521 = vrot.slane %v460, 1
        %v522 = vrot.slane %v461, 1
        %v523 = vsel %vm505, %v521, %v522
        %v524 = vrot.slane %v462, 1
        %v525 = vsel %vm505, %v522, %v524
        %v526 = vrot.slane %v463, 1
        %v527 = vrot.slane %v464, 1
        %v528 = vsel %vm505, %v526, %v527
        %v529 = vrot.slane %v465, 1
        %v530 = vsel %vm505, %v527, %v529
        %v531 = vrot.slane %v466, 1
        %v532 = vrot.slane %v467, 1
        %v533 = vsel %vm505, %v531, %v532
        %v534 = vrot.slane %v468, 1
        %v535 = vsel %vm505, %v532, %v534
        %v536 = vrot.slane %v469, 1
        %v537 = vrot.slane %v470, 1
        %v538 = vsel %vm505, %v536, %v537
        %v539 = vrot.slane %v471, 1
        %v540 = vsel %vm505, %v537, %v539
        %v541 = vrot.slane %v472, 1
        %v542 = vrot.slane %v473, 1
        %v543 = vsel %vm505, %v541, %v542
        %v544 = vrot.slane %v474, 1
        %v545 = vsel %vm505, %v542, %v544
        %546 = vrot.lane.b32.xlu0 %v508, 4
        %v547 = vpop.permute.xlu0 %546
        %548 = vrot.lane.b32.xlu0 %v510, 4
        %v549 = vpop.permute.xlu0 %548
        %550 = vrot.lane.b32.xlu0 %v513, 4
        %v551 = vpop.permute.xlu0 %550
        %552 = vrot.lane.b32.xlu0 %v515, 4
        %v553 = vpop.permute.xlu0 %552
        %554 = vrot.lane.b32.xlu0 %v518, 4
        %v555 = vpop.permute.xlu0 %554
        %556 = vrot.lane.b32.xlu0 %v520, 4
        %v557 = vpop.permute.xlu0 %556
        %558 = vrot.lane.b32.xlu0 %v523, 4
        %v559 = vpop.permute.xlu0 %558
        %560 = vrot.lane.b32.xlu0 %v525, 4
        %v561 = vpop.permute.xlu0 %560
        %562 = vrot.lane.b32.xlu0 %v528, 4
        %v563 = vpop.permute.xlu0 %562
        %564 = vrot.lane.b32.xlu0 %v530, 4
        %v565 = vpop.permute.xlu0 %564
        %566 = vrot.lane.b32.xlu0 %v533, 4
        %v567 = vpop.permute.xlu0 %566
        %568 = vrot.lane.b32.xlu0 %v535, 4
        %v569 = vpop.permute.xlu0 %568
        %570 = vrot.lane.b32.xlu0 %v538, 4
        %v571 = vpop.permute.xlu0 %570
        %572 = vrot.lane.b32.xlu0 %v540, 4
        %v573 = vpop.permute.xlu0 %572
        %574 = vrot.lane.b32.xlu0 %v543, 4
        %v575 = vpop.permute.xlu0 %574
        %576 = vrot.lane.b32.xlu0 %v545, 4
        %v577 = vpop.permute.xlu0 %576
        %vm594 = vcmask 1045504
        %v595 = vrot.slane %v451, 2
        %v596 = vrot.slane %v452, 2
        %v597 = vsel %vm594, %v595, %v596
        %v598 = vrot.slane %v453, 2
        %v599 = vsel %vm594, %v596, %v598
        %v600 = vrot.slane %v454, 2
        %v601 = vrot.slane %v455, 2
        %v602 = vsel %vm594, %v600, %v601
        %v603 = vrot.slane %v456, 2
        %v604 = vsel %vm594, %v601, %v603
        %v605 = vrot.slane %v457, 2
        %v606 = vrot.slane %v458, 2
        %v607 = vsel %vm594, %v605, %v606
        %v608 = vrot.slane %v459, 2
        %v609 = vsel %vm594, %v606, %v608
        %v610 = vrot.slane %v460, 2
        %v611 = vrot.slane %v461, 2
        %v612 = vsel %vm594, %v610, %v611
        %v613 = vrot.slane %v462, 2
        %v614 = vsel %vm594, %v611, %v613
        %v615 = vrot.slane %v463, 2
        %v616 = vrot.slane %v464, 2
        %v617 = vsel %vm594, %v615, %v616
        %v618 = vrot.slane %v465, 2
        %v619 = vsel %vm594, %v616, %v618
        %v620 = vrot.slane %v466, 2
        %v621 = vrot.slane %v467, 2
        %v622 = vsel %vm594, %v620, %v621
        %v623 = vrot.slane %v468, 2
        %v624 = vsel %vm594, %v621, %v623
        %v625 = vrot.slane %v469, 2
        %v626 = vrot.slane %v470, 2
        %v627 = vsel %vm594, %v625, %v626
        %v628 = vrot.slane %v471, 2
        %v629 = vsel %vm594, %v626, %v628
        %v630 = vrot.slane %v472, 2
        %v631 = vrot.slane %v473, 2
        %v632 = vsel %vm594, %v630, %v631
        %v633 = vrot.slane %v474, 2
        %v634 = vsel %vm594, %v631, %v633
        %635 = vrot.lane.b32.xlu0 %v597, 8
        %v636 = vpop.permute.xlu0 %635
        %637 = vrot.lane.b32.xlu0 %v599, 8
        %v638 = vpop.permute.xlu0 %637
        %639 = vrot.lane.b32.xlu0 %v602, 8
        %v640 = vpop.permute.xlu0 %639
        %641 = vrot.lane.b32.xlu0 %v604, 8
        %v642 = vpop.permute.xlu0 %641
        %643 = vrot.lane.b32.xlu0 %v607, 8
        %v644 = vpop.permute.xlu0 %643
        %645 = vrot.lane.b32.xlu0 %v609, 8
        %v646 = vpop.permute.xlu0 %645
        %647 = vrot.lane.b32.xlu0 %v612, 8
        %v648 = vpop.permute.xlu0 %647
        %649 = vrot.lane.b32.xlu0 %v614, 8
        %v650 = vpop.permute.xlu0 %649
        %651 = vrot.lane.b32.xlu0 %v617, 8
        %v652 = vpop.permute.xlu0 %651
        %653 = vrot.lane.b32.xlu0 %v619, 8
        %v654 = vpop.permute.xlu0 %653
        %655 = vrot.lane.b32.xlu0 %v622, 8
        %v656 = vpop.permute.xlu0 %655
        %657 = vrot.lane.b32.xlu0 %v624, 8
        %v658 = vpop.permute.xlu0 %657
        %659 = vrot.lane.b32.xlu0 %v627, 8
        %v660 = vpop.permute.xlu0 %659
        %661 = vrot.lane.b32.xlu0 %v629, 8
        %v662 = vpop.permute.xlu0 %661
        %663 = vrot.lane.b32.xlu0 %v632, 8
        %v664 = vpop.permute.xlu0 %663
        %665 = vrot.lane.b32.xlu0 %v634, 8
        %v666 = vpop.permute.xlu0 %665
        %685 = vrot.lane.b32.xlu0 %v454, 12
        %v686 = vpop.permute.xlu0 %685
        %687 = vrot.lane.b32.xlu0 %v455, 12
        %v688 = vpop.permute.xlu0 %687
        %689 = vrot.lane.b32.xlu0 %v457, 12
        %v690 = vpop.permute.xlu0 %689
        %691 = vrot.lane.b32.xlu0 %v458, 12
        %v692 = vpop.permute.xlu0 %691
        %693 = vrot.lane.b32.xlu0 %v460, 12
        %v694 = vpop.permute.xlu0 %693
        %695 = vrot.lane.b32.xlu0 %v461, 12
        %v696 = vpop.permute.xlu0 %695
        %697 = vrot.lane.b32.xlu0 %v463, 12
        %v698 = vpop.permute.xlu0 %697
        %699 = vrot.lane.b32.xlu0 %v464, 12
        %v700 = vpop.permute.xlu0 %699
        %701 = vrot.lane.b32.xlu0 %v466, 12
        %v702 = vpop.permute.xlu0 %701
        %703 = vrot.lane.b32.xlu0 %v467, 12
        %v704 = vpop.permute.xlu0 %703
        %705 = vrot.lane.b32.xlu0 %v469, 12
        %v706 = vpop.permute.xlu0 %705
        %707 = vrot.lane.b32.xlu0 %v470, 12
        %v708 = vpop.permute.xlu0 %707
        %709 = vrot.lane.b32.xlu0 %v472, 12
        %v710 = vpop.permute.xlu0 %709
        %711 = vrot.lane.b32.xlu0 %v473, 12
        %v712 = vpop.permute.xlu0 %711
        %713 = vrot.lane.b32.xlu0 %v475, 12
        %v714 = vpop.permute.xlu0 %713
        %715 = vrot.lane.b32.xlu0 %v476, 12
        %v716 = vpop.permute.xlu0 %715
        %v734 = vrot.slane %v475, 1
        %v735 = vrot.slane %v476, 1
        %v736 = vsel %vm505, %v734, %v735
        %v737 = vrot.slane %v477, 1
        %v738 = vsel %vm505, %v735, %v737
        %739 = vrot.lane.b32.xlu0 %v513, 16
        %v740 = vpop.permute.xlu0 %739
        %741 = vrot.lane.b32.xlu0 %v515, 16
        %v742 = vpop.permute.xlu0 %741
        %743 = vrot.lane.b32.xlu0 %v518, 16
        %v744 = vpop.permute.xlu0 %743
        %745 = vrot.lane.b32.xlu0 %v520, 16
        %v746 = vpop.permute.xlu0 %745
        %747 = vrot.lane.b32.xlu0 %v523, 16
        %v748 = vpop.permute.xlu0 %747
        %749 = vrot.lane.b32.xlu0 %v525, 16
        %v750 = vpop.permute.xlu0 %749
        %751 = vrot.lane.b32.xlu0 %v528, 16
        %v752 = vpop.permute.xlu0 %751
        %753 = vrot.lane.b32.xlu0 %v530, 16
        %v754 = vpop.permute.xlu0 %753
        %755 = vrot.lane.b32.xlu0 %v533, 16
        %v756 = vpop.permute.xlu0 %755
        %757 = vrot.lane.b32.xlu0 %v535, 16
        %v758 = vpop.permute.xlu0 %757
        %759 = vrot.lane.b32.xlu0 %v538, 16
        %v760 = vpop.permute.xlu0 %759
        %761 = vrot.lane.b32.xlu0 %v540, 16
        %v762 = vpop.permute.xlu0 %761
        %763 = vrot.lane.b32.xlu0 %v543, 16
        %v764 = vpop.permute.xlu0 %763
        %765 = vrot.lane.b32.xlu0 %v545, 16
        %v766 = vpop.permute.xlu0 %765
        %767 = vrot.lane.b32.xlu0 %v736, 16
        %v768 = vpop.permute.xlu0 %767
        %769 = vrot.lane.b32.xlu0 %v738, 16
        %v770 = vpop.permute.xlu0 %769
        %v787 = vrot.slane %v475, 2
        %v788 = vrot.slane %v476, 2
        %v789 = vsel %vm594, %v787, %v788
        %v790 = vrot.slane %v477, 2
        %v791 = vsel %vm594, %v788, %v790
        %792 = vrot.lane.b32.xlu0 %v602, 20
        %v793 = vpop.permute.xlu0 %792
        %794 = vrot.lane.b32.xlu0 %v604, 20
        %v795 = vpop.permute.xlu0 %794
        %796 = vrot.lane.b32.xlu0 %v607, 20
        %v797 = vpop.permute.xlu0 %796
        %798 = vrot.lane.b32.xlu0 %v609, 20
        %v799 = vpop.permute.xlu0 %798
        %800 = vrot.lane.b32.xlu0 %v612, 20
        %v801 = vpop.permute.xlu0 %800
        %802 = vrot.lane.b32.xlu0 %v614, 20
        %v803 = vpop.permute.xlu0 %802
        %804 = vrot.lane.b32.xlu0 %v617, 20
        %v805 = vpop.permute.xlu0 %804
        %806 = vrot.lane.b32.xlu0 %v619, 20
        %v807 = vpop.permute.xlu0 %806
        %808 = vrot.lane.b32.xlu0 %v622, 20
        %v809 = vpop.permute.xlu0 %808
        %810 = vrot.lane.b32.xlu0 %v624, 20
        %v811 = vpop.permute.xlu0 %810
        %812 = vrot.lane.b32.xlu0 %v627, 20
        %v813 = vpop.permute.xlu0 %812
        %814 = vrot.lane.b32.xlu0 %v629, 20
        %v815 = vpop.permute.xlu0 %814
        %816 = vrot.lane.b32.xlu0 %v632, 20
        %v817 = vpop.permute.xlu0 %816
        %818 = vrot.lane.b32.xlu0 %v634, 20
        %v819 = vpop.permute.xlu0 %818
        %820 = vrot.lane.b32.xlu0 %v789, 20
        %v821 = vpop.permute.xlu0 %820
        %822 = vrot.lane.b32.xlu0 %v791, 20
        %v823 = vpop.permute.xlu0 %822
        %842 = vrot.lane.b32.xlu0 %v457, 24
        %v843 = vpop.permute.xlu0 %842
        %844 = vrot.lane.b32.xlu0 %v458, 24
        %v845 = vpop.permute.xlu0 %844
        %846 = vrot.lane.b32.xlu0 %v460, 24
        %v847 = vpop.permute.xlu0 %846
        %848 = vrot.lane.b32.xlu0 %v461, 24
        %v849 = vpop.permute.xlu0 %848
        %850 = vrot.lane.b32.xlu0 %v463, 24
        %v851 = vpop.permute.xlu0 %850
        %852 = vrot.lane.b32.xlu0 %v464, 24
        %v853 = vpop.permute.xlu0 %852
        %854 = vrot.lane.b32.xlu0 %v466, 24
        %v855 = vpop.permute.xlu0 %854
        %856 = vrot.lane.b32.xlu0 %v467, 24
        %v857 = vpop.permute.xlu0 %856
        %858 = vrot.lane.b32.xlu0 %v469, 24
        %v859 = vpop.permute.xlu0 %858
        %860 = vrot.lane.b32.xlu0 %v470, 24
        %v861 = vpop.permute.xlu0 %860
        %862 = vrot.lane.b32.xlu0 %v472, 24
        %v863 = vpop.permute.xlu0 %862
        %864 = vrot.lane.b32.xlu0 %v473, 24
        %v865 = vpop.permute.xlu0 %864
        %866 = vrot.lane.b32.xlu0 %v475, 24
        %v867 = vpop.permute.xlu0 %866
        %868 = vrot.lane.b32.xlu0 %v476, 24
        %v869 = vpop.permute.xlu0 %868
        %870 = vrot.lane.b32.xlu0 %v478, 24
        %v871 = vpop.permute.xlu0 %870
        %872 = vrot.lane.b32.xlu0 %v479, 24
        %v873 = vpop.permute.xlu0 %872
        %v891 = vrot.slane %v478, 1
        %v892 = vrot.slane %v479, 1
        %v893 = vsel %vm505, %v891, %v892
        %v894 = vrot.slane %v480, 1
        %v895 = vsel %vm505, %v892, %v894
        %896 = vrot.lane.b32.xlu0 %v518, 28
        %v897 = vpop.permute.xlu0 %896
        %898 = vrot.lane.b32.xlu0 %v520, 28
        %v899 = vpop.permute.xlu0 %898
        %900 = vrot.lane.b32.xlu0 %v523, 28
        %v901 = vpop.permute.xlu0 %900
        %902 = vrot.lane.b32.xlu0 %v525, 28
        %v903 = vpop.permute.xlu0 %902
        %904 = vrot.lane.b32.xlu0 %v528, 28
        %v905 = vpop.permute.xlu0 %904
        %906 = vrot.lane.b32.xlu0 %v530, 28
        %v907 = vpop.permute.xlu0 %906
        %908 = vrot.lane.b32.xlu0 %v533, 28
        %v909 = vpop.permute.xlu0 %908
        %910 = vrot.lane.b32.xlu0 %v535, 28
        %v911 = vpop.permute.xlu0 %910
        %912 = vrot.lane.b32.xlu0 %v538, 28
        %v913 = vpop.permute.xlu0 %912
        %914 = vrot.lane.b32.xlu0 %v540, 28
        %v915 = vpop.permute.xlu0 %914
        %916 = vrot.lane.b32.xlu0 %v543, 28
        %v917 = vpop.permute.xlu0 %916
        %918 = vrot.lane.b32.xlu0 %v545, 28
        %v919 = vpop.permute.xlu0 %918
        %920 = vrot.lane.b32.xlu0 %v736, 28
        %v921 = vpop.permute.xlu0 %920
        %922 = vrot.lane.b32.xlu0 %v738, 28
        %v923 = vpop.permute.xlu0 %922
        %924 = vrot.lane.b32.xlu0 %v893, 28
        %v925 = vpop.permute.xlu0 %924
        %926 = vrot.lane.b32.xlu0 %v895, 28
        %v927 = vpop.permute.xlu0 %926
        %v944 = vrot.slane %v478, 2
        %v945 = vrot.slane %v479, 2
        %v946 = vsel %vm594, %v944, %v945
        %v947 = vrot.slane %v480, 2
        %v948 = vsel %vm594, %v945, %v947
        %949 = vrot.lane.b32.xlu0 %v607, 32
        %v950 = vpop.permute.xlu0 %949
        %951 = vrot.lane.b32.xlu0 %v609, 32
        %v952 = vpop.permute.xlu0 %951
        %953 = vrot.lane.b32.xlu0 %v612, 32
        %v954 = vpop.permute.xlu0 %953
        %955 = vrot.lane.b32.xlu0 %v614, 32
        %v956 = vpop.permute.xlu0 %955
        %957 = vrot.lane.b32.xlu0 %v617, 32
        %v958 = vpop.permute.xlu0 %957
        %959 = vrot.lane.b32.xlu0 %v619, 32
        %v960 = vpop.permute.xlu0 %959
        %961 = vrot.lane.b32.xlu0 %v622, 32
        %v962 = vpop.permute.xlu0 %961
        %963 = vrot.lane.b32.xlu0 %v624, 32
        %v964 = vpop.permute.xlu0 %963
        %965 = vrot.lane.b32.xlu0 %v627, 32
        %v966 = vpop.permute.xlu0 %965
        %967 = vrot.lane.b32.xlu0 %v629, 32
        %v968 = vpop.permute.xlu0 %967
        %969 = vrot.lane.b32.xlu0 %v632, 32
        %v970 = vpop.permute.xlu0 %969
        %971 = vrot.lane.b32.xlu0 %v634, 32
        %v972 = vpop.permute.xlu0 %971
        %973 = vrot.lane.b32.xlu0 %v789, 32
        %v974 = vpop.permute.xlu0 %973
        %975 = vrot.lane.b32.xlu0 %v791, 32
        %v976 = vpop.permute.xlu0 %975
        %977 = vrot.lane.b32.xlu0 %v946, 32
        %v978 = vpop.permute.xlu0 %977
        %979 = vrot.lane.b32.xlu0 %v948, 32
        %v980 = vpop.permute.xlu0 %979
        %v997 = vsel %vm366, %v451, %v547
        %v998 = vsel %vm366, %v452, %v549
        %v999 = vsel %vm366, %v454, %v551
        %v1000 = vsel %vm366, %v455, %v553
        %v1001 = vsel %vm366, %v457, %v555
        %v1002 = vsel %vm366, %v458, %v557
        %v1003 = vsel %vm366, %v460, %v559
        %v1004 = vsel %vm366, %v461, %v561
        %v1005 = vsel %vm366, %v463, %v563
        %v1006 = vsel %vm366, %v464, %v565
        %v1007 = vsel %vm366, %v466, %v567
        %v1008 = vsel %vm366, %v467, %v569
        %v1009 = vsel %vm366, %v469, %v571
        %v1010 = vsel %vm366, %v470, %v573
        %v1011 = vsel %vm366, %v472, %v575
        %v1012 = vsel %vm366, %v473, %v577
        %vm1013 = vcmask 64512
        %v1014 = vsel %vm1013, %v997, %v636
        %v1015 = vsel %vm1013, %v998, %v638
        %v1016 = vsel %vm1013, %v999, %v640
        %v1017 = vsel %vm1013, %v1000, %v642
        %v1018 = vsel %vm1013, %v1001, %v644
        %v1019 = vsel %vm1013, %v1002, %v646
        %v1020 = vsel %vm1013, %v1003, %v648
        %v1021 = vsel %vm1013, %v1004, %v650
        %v1022 = vsel %vm1013, %v1005, %v652
        %v1023 = vsel %vm1013, %v1006, %v654
        %v1024 = vsel %vm1013, %v1007, %v656
        %v1025 = vsel %vm1013, %v1008, %v658
        %v1026 = vsel %vm1013, %v1009, %v660
        %v1027 = vsel %vm1013, %v1010, %v662
        %v1028 = vsel %vm1013, %v1011, %v664
        %v1029 = vsel %vm1013, %v1012, %v666
        %vm1030 = vcmask 97280
        %v1031 = vsel %vm1030, %v1014, %v686
        %v1032 = vsel %vm1030, %v1015, %v688
        %v1033 = vsel %vm1030, %v1016, %v690
        %v1034 = vsel %vm1030, %v1017, %v692
        %v1035 = vsel %vm1030, %v1018, %v694
        %v1036 = vsel %vm1030, %v1019, %v696
        %v1037 = vsel %vm1030, %v1020, %v698
        %v1038 = vsel %vm1030, %v1021, %v700
        %v1039 = vsel %vm1030, %v1022, %v702
        %v1040 = vsel %vm1030, %v1023, %v704
        %v1041 = vsel %vm1030, %v1024, %v706
        %v1042 = vsel %vm1030, %v1025, %v708
        %v1043 = vsel %vm1030, %v1026, %v710
        %v1044 = vsel %vm1030, %v1027, %v712
        %v1045 = vsel %vm1030, %v1028, %v714
        %v1046 = vsel %vm1030, %v1029, %v716
        %vm1047 = vcmask 130048
        %v1048 = vsel %vm1047, %v1031, %v740
        %v1049 = vsel %vm1047, %v1032, %v742
        %v1050 = vsel %vm1047, %v1033, %v744
        %v1051 = vsel %vm1047, %v1034, %v746
        %v1052 = vsel %vm1047, %v1035, %v748
        %v1053 = vsel %vm1047, %v1036, %v750
        %v1054 = vsel %vm1047, %v1037, %v752
        %v1055 = vsel %vm1047, %v1038, %v754
        %v1056 = vsel %vm1047, %v1039, %v756
        %v1057 = vsel %vm1047, %v1040, %v758
        %v1058 = vsel %vm1047, %v1041, %v760
        %v1059 = vsel %vm1047, %v1042, %v762
        %v1060 = vsel %vm1047, %v1043, %v764
        %v1061 = vsel %vm1047, %v1044, %v766
        %v1062 = vsel %vm1047, %v1045, %v768
        %v1063 = vsel %vm1047, %v1046, %v770
        %vm1064 = vcmask 162816
        %v1065 = vsel %vm1064, %v1048, %v793
        %v1066 = vsel %vm1064, %v1049, %v795
        %v1067 = vsel %vm1064, %v1050, %v797
        %v1068 = vsel %vm1064, %v1051, %v799
        %v1069 = vsel %vm1064, %v1052, %v801
        %v1070 = vsel %vm1064, %v1053, %v803
        %v1071 = vsel %vm1064, %v1054, %v805
        %v1072 = vsel %vm1064, %v1055, %v807
        %v1073 = vsel %vm1064, %v1056, %v809
        %v1074 = vsel %vm1064, %v1057, %v811
        %v1075 = vsel %vm1064, %v1058, %v813
        %v1076 = vsel %vm1064, %v1059, %v815
        %v1077 = vsel %vm1064, %v1060, %v817
        %v1078 = vsel %vm1064, %v1061, %v819
        %v1079 = vsel %vm1064, %v1062, %v821
        %v1080 = vsel %vm1064, %v1063, %v823
        %vm1081 = vcmask 195584
        %v1082 = vsel %vm1081, %v1065, %v843
        %v1083 = vsel %vm1081, %v1066, %v845
        %v1084 = vsel %vm1081, %v1067, %v847
        %v1085 = vsel %vm1081, %v1068, %v849
        %v1086 = vsel %vm1081, %v1069, %v851
        %v1087 = vsel %vm1081, %v1070, %v853
        %v1088 = vsel %vm1081, %v1071, %v855
        %v1089 = vsel %vm1081, %v1072, %v857
        %v1090 = vsel %vm1081, %v1073, %v859
        %v1091 = vsel %vm1081, %v1074, %v861
        %v1092 = vsel %vm1081, %v1075, %v863
        %v1093 = vsel %vm1081, %v1076, %v865
        %v1094 = vsel %vm1081, %v1077, %v867
        %v1095 = vsel %vm1081, %v1078, %v869
        %v1096 = vsel %vm1081, %v1079, %v871
        %v1097 = vsel %vm1081, %v1080, %v873
        %vm1098 = vcmask 228352
        %v1099 = vsel %vm1098, %v1082, %v897
        %v1100 = vsel %vm1098, %v1083, %v899
        %v1101 = vsel %vm1098, %v1084, %v901
        %v1102 = vsel %vm1098, %v1085, %v903
        %v1103 = vsel %vm1098, %v1086, %v905
        %v1104 = vsel %vm1098, %v1087, %v907
        %v1105 = vsel %vm1098, %v1088, %v909
        %v1106 = vsel %vm1098, %v1089, %v911
        %v1107 = vsel %vm1098, %v1090, %v913
        %v1108 = vsel %vm1098, %v1091, %v915
        %v1109 = vsel %vm1098, %v1092, %v917
        %v1110 = vsel %vm1098, %v1093, %v919
        %v1111 = vsel %vm1098, %v1094, %v921
        %v1112 = vsel %vm1098, %v1095, %v923
        %v1113 = vsel %vm1098, %v1096, %v925
        %v1114 = vsel %vm1098, %v1097, %v927
        %vm1115 = vcmask 261120
        %v1116 = vsel %vm1115, %v1099, %v950
        %v1117 = vsel %vm1115, %v1100, %v952
        %v1118 = vsel %vm1115, %v1101, %v954
        %v1119 = vsel %vm1115, %v1102, %v956
        %v1120 = vsel %vm1115, %v1103, %v958
        %v1121 = vsel %vm1115, %v1104, %v960
        %v1122 = vsel %vm1115, %v1105, %v962
        %v1123 = vsel %vm1115, %v1106, %v964
        %v1124 = vsel %vm1115, %v1107, %v966
        %v1125 = vsel %vm1115, %v1108, %v968
        %v1126 = vsel %vm1115, %v1109, %v970
        %v1127 = vsel %vm1115, %v1110, %v972
        %v1128 = vsel %vm1115, %v1111, %v974
        %v1129 = vsel %vm1115, %v1112, %v976
        %v1130 = vsel %vm1115, %v1113, %v978
        %v1131 = vsel %vm1115, %v1114, %v980
        %v1132 = vpack.c.bf16 %v1117, %v1116
        %v1133 = vpack.c.bf16 %v1119, %v1118
        %v1134 = vpack.c.bf16 %v1121, %v1120
        %v1135 = vpack.c.bf16 %v1123, %v1122
        %v1136 = vpack.c.bf16 %v1125, %v1124
        %v1137 = vpack.c.bf16 %v1127, %v1126
        %v1138 = vpack.c.bf16 %v1129, %v1128
        %v1139 = vpack.c.bf16 %v1131, %v1130
        %v1141 = vlaneseq
        %v1142 = vshrl.u32 %v1141, 7
        %v1143 = vsub.s32 0, %v1142
        %v1144 = vrot.slane %v450, %v1143
        %v1151 = vunpack.c.l.b16 %v445
        %v1152 = vunpack.c.l.b16 %v446
        %v1153 = vunpack.c.l.b16 %v447
        %v1154 = vunpack.c.l.b16 %v448
        %v1155 = vunpack.c.l.b16 %v449
        %v1156 = vpack.c.b16 %v1152, %v1151
        %v1157 = vpack.c.b16 %v1154, %v1153
        %v1158 = vpack.c.b16 %v1155, %v1155
        %vm1161 = vcmask 293888
        %v1163 = vsel %vm1161, %v1132, 0
        %v1166 = vsel %vm1161, %v1133, 0
        %v1169 = vsel %vm1161, %v1134, 0
        %v1172 = vsel %vm1161, %v1135, 0
        %v1175 = vsel %vm1161, %v1136, 0
        %v1178 = vsel %vm1161, %v1137, 0
        %v1181 = vsel %vm1161, %v1138, 0
        %v1184 = vsel %vm1161, %v1139, 0
        %vm1186 = vcmask 1041408
        %v1188 = vsel %vm1186, %v1158, 0
        %1190 = vmatprep.subr.bf16.mxu0 0
        %1191 = vmatpush1.bf16.msra.mxu0 %v1156
        %1192 = vmatprep.subr.bf16.mxu0 0
        %1193 = vmatpush1.bf16.msra.mxu0 %v1157
        %1194 = vmatprep.subr.bf16.mxu0 0
        %1195 = vmatpush1.bf16.msra.mxu0 %v1188
        %1196 = vmatprep.subr.bf16.mxu0 0
        %1197 = vmatpush1.bf16.msra.mxu0 0
        %1198 = vmatprep.subr.bf16.mxu0 0
        %1199 = vmatpush1.bf16.msra.mxu0 0
        %1200 = vmatprep.subr.bf16.mxu0 0
        %1201 = vmatpush1.bf16.msra.mxu0 0
        %1202 = vmatprep.subr.bf16.mxu0 0
        %1203 = vmatpush1.bf16.msra.mxu0 0
        %1204 = vmatprep.subr.bf16.mxu0 0
        %1205 = vmatpush1.bf16.msra.mxu0 0
        %1206 = vmatprep.subr.bf16.mxu0 0
        %1207 = vmatpush1.bf16.msra.mxu0 0
        %1208 = vmatprep.subr.bf16.mxu0 0
        %1209 = vmatpush1.bf16.msra.mxu0 0
        %1210 = vmatprep.subr.bf16.mxu0 0
        %1211 = vmatpush1.bf16.msra.mxu0 0
        %1212 = vmatprep.subr.bf16.mxu0 0
        %1213 = vmatpush1.bf16.msra.mxu0 0
        %1214 = vmatprep.subr.bf16.mxu0 0
        %1215 = vmatpush1.bf16.msra.mxu0 0
        %1216 = vmatprep.subr.bf16.mxu0 0
        %1217 = vmatpush1.bf16.msra.mxu0 0
        %1218 = vmatprep.subr.bf16.mxu0 0
        %1219 = vmatpush1.bf16.msra.mxu0 0
        %1220 = vmatprep.subr.bf16.mxu0 0
        %1221 = vmatpush1.bf16.msra.mxu0 0
        %1222 = vmatprep.mubr.bf16.mxu0 0
        %1223 = vmatmul.mubr.bf16.gmra.mrb[0].mxu0 %v1163
        %v1224 = vpop.f32.mrb[0].mxu0
        %v1225 = vadd.f32 %v1144, %v1224
        %v1226 = vpop.f32.mrb[0].mxu0
        %v1227 = vpop.f32.mrb[0].mxu0
        %v1228 = vadd.f32 %v1144, %v1227
        %v1229 = vpop.f32.mrb[0].mxu0
        %1230 = vmatprep.mubr.bf16.mxu0 0
        %1231 = vmatmul.mubr.bf16.gmra.mrb[0].mxu0 %v1166
        %v1232 = vpop.f32.mrb[0].mxu0
        %v1233 = vadd.f32 %v1144, %v1232
        %v1234 = vpop.f32.mrb[0].mxu0
        %v1235 = vpop.f32.mrb[0].mxu0
        %v1236 = vadd.f32 %v1144, %v1235
        %v1237 = vpop.f32.mrb[0].mxu0
        %1238 = vmatprep.mubr.bf16.mxu0 0
        %1239 = vmatmul.mubr.bf16.gmra.mrb[0].mxu0 %v1169
        %v1240 = vpop.f32.mrb[0].mxu0
        %v1241 = vadd.f32 %v1144, %v1240
        %v1242 = vpop.f32.mrb[0].mxu0
        %v1243 = vpop.f32.mrb[0].mxu0
        %v1244 = vadd.f32 %v1144, %v1243
        %v1245 = vpop.f32.mrb[0].mxu0
        %1246 = vmatprep.mubr.bf16.mxu0 0
        %1247 = vmatmul.mubr.bf16.gmra.mrb[0].mxu0 %v1172
        %v1248 = vpop.f32.mrb[0].mxu0
        %v1249 = vadd.f32 %v1144, %v1248
        %v1250 = vpop.f32.mrb[0].mxu0
        %v1251 = vpop.f32.mrb[0].mxu0
        %v1252 = vadd.f32 %v1144, %v1251
        %v1253 = vpop.f32.mrb[0].mxu0
        %1254 = vmatprep.mubr.bf16.mxu0 0
        %1255 = vmatmul.mubr.bf16.gmra.mrb[0].mxu0 %v1175
        %v1256 = vpop.f32.mrb[0].mxu0
        %v1257 = vadd.f32 %v1144, %v1256
        %v1258 = vpop.f32.mrb[0].mxu0
        %v1259 = vpop.f32.mrb[0].mxu0
        %v1260 = vadd.f32 %v1144, %v1259
        %v1261 = vpop.f32.mrb[0].mxu0
        %1262 = vmatprep.mubr.bf16.mxu0 0
        %1263 = vmatmul.mubr.bf16.gmra.mrb[0].mxu0 %v1178
        %v1264 = vpop.f32.mrb[0].mxu0
        %v1265 = vadd.f32 %v1144, %v1264
        %v1266 = vpop.f32.mrb[0].mxu0
        %v1267 = vpop.f32.mrb[0].mxu0
        %v1268 = vadd.f32 %v1144, %v1267
        %v1269 = vpop.f32.mrb[0].mxu0
        %1270 = vmatprep.mubr.bf16.mxu0 0
        %1271 = vmatmul.mubr.bf16.gmra.mrb[0].mxu0 %v1181
        %v1272 = vpop.f32.mrb[0].mxu0
        %v1273 = vadd.f32 %v1144, %v1272
        %v1274 = vpop.f32.mrb[0].mxu0
        %v1275 = vpop.f32.mrb[0].mxu0
        %v1276 = vadd.f32 %v1144, %v1275
        %v1277 = vpop.f32.mrb[0].mxu0
        %1278 = vmatprep.mubr.bf16.mxu0 0
        %1279 = vmatmul.mubr.bf16.gmra.mrb[0].mxu0 %v1184
        %v1280 = vpop.f32.mrb[0].mxu0
        %v1281 = vadd.f32 %v1144, %v1280
        %v1282 = vpop.f32.mrb[0].mxu0
        %v1283 = vpop.f32.mrb[0].mxu0
        %v1284 = vadd.f32 %v1144, %v1283
        %v1285 = vpop.f32.mrb[0].mxu0
        %1286 = vdwg.mxu0
        %1287 = vst [vmem:[%s217] sm:$0xff] %v1225
        %1288 = vst [vmem:[%s217 + $0x8] sm:$0xff] %v1228
        %1289 = vst [vmem:[%s217 + $0x10] sm:$0xff] %v1233
        %1290 = vst [vmem:[%s217 + $0x18] sm:$0xff] %v1236
        %1291 = vst [vmem:[%s217 + $0x20] sm:$0xff] %v1241
        %1292 = vst [vmem:[%s217 + $0x28] sm:$0xff] %v1244
        %1293 = vst [vmem:[%s217 + $0x30] sm:$0xff] %v1249
        %1294 = vst [vmem:[%s217 + $0x38] sm:$0xff] %v1252
        %1295 = vst [vmem:[%s217 + $0x40] sm:$0xff] %v1257
        %1296 = vst [vmem:[%s217 + $0x48] sm:$0xff] %v1260
        %1297 = vst [vmem:[%s217 + $0x50] sm:$0xff] %v1265
        %1298 = vst [vmem:[%s217 + $0x58] sm:$0xff] %v1268
        %1299 = vst [vmem:[%s217 + $0x60] sm:$0xff] %v1273
        %1300 = vst [vmem:[%s217 + $0x68] sm:$0xff] %v1276
        %1301 = vst [vmem:[%s217 + $0x70] sm:$0xff] %v1281
        %1302 = vst [vmem:[%s217 + $0x78] sm:$0xff] %v1284
        %s1303 = scalar_lea.vmem [#allocation2], 192
        %v1304 = vld [vmem:[%s1303] sm:$0xff]
        %v1305 = vld [vmem:[%s1303 + $0x8] sm:$0xff]
        %v1306 = vld [vmem:[%s1303 + $0x10] sm:$0x3]
        %v1307 = vld [vmem:[%s1303 + $0x18] sm:$0xff]
        %v1308 = vld [vmem:[%s1303 + $0x20] sm:$0xff]
        %v1309 = vld [vmem:[%s1303 + $0x28] sm:$0x3]
        %v1310 = vld [vmem:[%s1303 + $0x30] sm:$0xff]
        %v1311 = vld [vmem:[%s1303 + $0x38] sm:$0xff]
        %v1312 = vld [vmem:[%s1303 + $0x40] sm:$0x3]
        %v1313 = vld [vmem:[%s1303 + $0x48] sm:$0xff]
        %v1314 = vld [vmem:[%s1303 + $0x50] sm:$0xff]
        %v1315 = vld [vmem:[%s1303 + $0x58] sm:$0x3]
        %v1316 = vld [vmem:[%s1303 + $0x60] sm:$0xff]
        %v1317 = vld [vmem:[%s1303 + $0x68] sm:$0xff]
        %v1318 = vld [vmem:[%s1303 + $0x70] sm:$0x3]
        %v1319 = vld [vmem:[%s1303 + $0x78] sm:$0xff]
        %v1320 = vld [vmem:[%s1303 + $0x80] sm:$0xff]
        %v1321 = vld [vmem:[%s1303 + $0x88] sm:$0x3]
        %v1322 = vld [vmem:[%s1303 + $0x90] sm:$0xff]
        %v1323 = vld [vmem:[%s1303 + $0x98] sm:$0xff]
        %v1324 = vld [vmem:[%s1303 + $0xa0] sm:$0x3]
        %v1325 = vld [vmem:[%s1303 + $0xa8] sm:$0xff]
        %v1326 = vld [vmem:[%s1303 + $0xb0] sm:$0xff]
        %v1327 = vld [vmem:[%s1303 + $0xb8] sm:$0x3]
        %v1328 = vld [vmem:[%s1303 + $0xc0] sm:$0xff]
        %v1329 = vld [vmem:[%s1303 + $0xc8] sm:$0xff]
        %v1330 = vld [vmem:[%s1303 + $0xd0] sm:$0x3]
        %v1331 = vld [vmem:[%s1303 + $0xd8] sm:$0xff]
        %v1332 = vld [vmem:[%s1303 + $0xe0] sm:$0xff]
        %v1333 = vld [vmem:[%s1303 + $0xe8] sm:$0x3]
        %v1358 = vrot.slane %v1304, 1
        %v1359 = vrot.slane %v1305, 1
        %v1360 = vsel %vm505, %v1358, %v1359
        %v1361 = vrot.slane %v1306, 1
        %v1362 = vsel %vm505, %v1359, %v1361
        %v1363 = vrot.slane %v1307, 1
        %v1364 = vrot.slane %v1308, 1
        %v1365 = vsel %vm505, %v1363, %v1364
        %v1366 = vrot.slane %v1309, 1
        %v1367 = vsel %vm505, %v1364, %v1366
        %v1368 = vrot.slane %v1310, 1
        %v1369 = vrot.slane %v1311, 1
        %v1370 = vsel %vm505, %v1368, %v1369
        %v1371 = vrot.slane %v1312, 1
        %v1372 = vsel %vm505, %v1369, %v1371
        %v1373 = vrot.slane %v1313, 1
        %v1374 = vrot.slane %v1314, 1
        %v1375 = vsel %vm505, %v1373, %v1374
        %v1376 = vrot.slane %v1315, 1
        %v1377 = vsel %vm505, %v1374, %v1376
        %v1378 = vrot.slane %v1316, 1
        %v1379 = vrot.slane %v1317, 1
        %v1380 = vsel %vm505, %v1378, %v1379
        %v1381 = vrot.slane %v1318, 1
        %v1382 = vsel %vm505, %v1379, %v1381
        %v1383 = vrot.slane %v1319, 1
        %v1384 = vrot.slane %v1320, 1
        %v1385 = vsel %vm505, %v1383, %v1384
        %v1386 = vrot.slane %v1321, 1
        %v1387 = vsel %vm505, %v1384, %v1386
        %v1388 = vrot.slane %v1322, 1
        %v1389 = vrot.slane %v1323, 1
        %v1390 = vsel %vm505, %v1388, %v1389
        %v1391 = vrot.slane %v1324, 1
        %v1392 = vsel %vm505, %v1389, %v1391
        %v1393 = vrot.slane %v1325, 1
        %v1394 = vrot.slane %v1326, 1
        %v1395 = vsel %vm505, %v1393, %v1394
        %v1396 = vrot.slane %v1327, 1
        %v1397 = vsel %vm505, %v1394, %v1396
        %1398 = vrot.lane.b32.xlu0 %v1360, 4
        %v1399 = vpop.permute.xlu0 %1398
        %1400 = vrot.lane.b32.xlu0 %v1362, 4
        %v1401 = vpop.permute.xlu0 %1400
        %1402 = vrot.lane.b32.xlu0 %v1365, 4
        %v1403 = vpop.permute.xlu0 %1402
        %1404 = vrot.lane.b32.xlu0 %v1367, 4
        %v1405 = vpop.permute.xlu0 %1404
        %1406 = vrot.lane.b32.xlu0 %v1370, 4
        %v1407 = vpop.permute.xlu0 %1406
        %1408 = vrot.lane.b32.xlu0 %v1372, 4
        %v1409 = vpop.permute.xlu0 %1408
        %1410 = vrot.lane.b32.xlu0 %v1375, 4
        %v1411 = vpop.permute.xlu0 %1410
        %1412 = vrot.lane.b32.xlu0 %v1377, 4
        %v1413 = vpop.permute.xlu0 %1412
        %1414 = vrot.lane.b32.xlu0 %v1380, 4
        %v1415 = vpop.permute.xlu0 %1414
        %1416 = vrot.lane.b32.xlu0 %v1382, 4
        %v1417 = vpop.permute.xlu0 %1416
        %1418 = vrot.lane.b32.xlu0 %v1385, 4
        %v1419 = vpop.permute.xlu0 %1418
        %1420 = vrot.lane.b32.xlu0 %v1387, 4
        %v1421 = vpop.permute.xlu0 %1420
        %1422 = vrot.lane.b32.xlu0 %v1390, 4
        %v1423 = vpop.permute.xlu0 %1422
        %1424 = vrot.lane.b32.xlu0 %v1392, 4
        %v1425 = vpop.permute.xlu0 %1424
        %1426 = vrot.lane.b32.xlu0 %v1395, 4
        %v1427 = vpop.permute.xlu0 %1426
        %1428 = vrot.lane.b32.xlu0 %v1397, 4
        %v1429 = vpop.permute.xlu0 %1428
        %v1446 = vrot.slane %v1304, 2
        %v1447 = vrot.slane %v1305, 2
        %v1448 = vsel %vm594, %v1446, %v1447
        %v1449 = vrot.slane %v1306, 2
        %v1450 = vsel %vm594, %v1447, %v1449
        %v1451 = vrot.slane %v1307, 2
        %v1452 = vrot.slane %v1308, 2
        %v1453 = vsel %vm594, %v1451, %v1452
        %v1454 = vrot.slane %v1309, 2
        %v1455 = vsel %vm594, %v1452, %v1454
        %v1456 = vrot.slane %v1310, 2
        %v1457 = vrot.slane %v1311, 2
        %v1458 = vsel %vm594, %v1456, %v1457
        %v1459 = vrot.slane %v1312, 2
        %v1460 = vsel %vm594, %v1457, %v1459
        %v1461 = vrot.slane %v1313, 2
        %v1462 = vrot.slane %v1314, 2
        %v1463 = vsel %vm594, %v1461, %v1462
        %v1464 = vrot.slane %v1315, 2
        %v1465 = vsel %vm594, %v1462, %v1464
        %v1466 = vrot.slane %v1316, 2
        %v1467 = vrot.slane %v1317, 2
        %v1468 = vsel %vm594, %v1466, %v1467
        %v1469 = vrot.slane %v1318, 2
        %v1470 = vsel %vm594, %v1467, %v1469
        %v1471 = vrot.slane %v1319, 2
        %v1472 = vrot.slane %v1320, 2
        %v1473 = vsel %vm594, %v1471, %v1472
        %v1474 = vrot.slane %v1321, 2
        %v1475 = vsel %vm594, %v1472, %v1474
        %v1476 = vrot.slane %v1322, 2
        %v1477 = vrot.slane %v1323, 2
        %v1478 = vsel %vm594, %v1476, %v1477
        %v1479 = vrot.slane %v1324, 2
        %v1480 = vsel %vm594, %v1477, %v1479
        %v1481 = vrot.slane %v1325, 2
        %v1482 = vrot.slane %v1326, 2
        %v1483 = vsel %vm594, %v1481, %v1482
        %v1484 = vrot.slane %v1327, 2
        %v1485 = vsel %vm594, %v1482, %v1484
        %1486 = vrot.lane.b32.xlu0 %v1448, 8
        %v1487 = vpop.permute.xlu0 %1486
        %1488 = vrot.lane.b32.xlu0 %v1450, 8
        %v1489 = vpop.permute.xlu0 %1488
        %1490 = vrot.lane.b32.xlu0 %v1453, 8
        %v1491 = vpop.permute.xlu0 %1490
        %1492 = vrot.lane.b32.xlu0 %v1455, 8
        %v1493 = vpop.permute.xlu0 %1492
        %1494 = vrot.lane.b32.xlu0 %v1458, 8
        %v1495 = vpop.permute.xlu0 %1494
        %1496 = vrot.lane.b32.xlu0 %v1460, 8
        %v1497 = vpop.permute.xlu0 %1496
        %1498 = vrot.lane.b32.xlu0 %v1463, 8
        %v1499 = vpop.permute.xlu0 %1498
        %1500 = vrot.lane.b32.xlu0 %v1465, 8
        %v1501 = vpop.permute.xlu0 %1500
        %1502 = vrot.lane.b32.xlu0 %v1468, 8
        %v1503 = vpop.permute.xlu0 %1502
        %1504 = vrot.lane.b32.xlu0 %v1470, 8
        %v1505 = vpop.permute.xlu0 %1504
        %1506 = vrot.lane.b32.xlu0 %v1473, 8
        %v1507 = vpop.permute.xlu0 %1506
        %1508 = vrot.lane.b32.xlu0 %v1475, 8
        %v1509 = vpop.permute.xlu0 %1508
        %1510 = vrot.lane.b32.xlu0 %v1478, 8
        %v1511 = vpop.permute.xlu0 %1510
        %1512 = vrot.lane.b32.xlu0 %v1480, 8
        %v1513 = vpop.permute.xlu0 %1512
        %1514 = vrot.lane.b32.xlu0 %v1483, 8
        %v1515 = vpop.permute.xlu0 %1514
        %1516 = vrot.lane.b32.xlu0 %v1485, 8
        %v1517 = vpop.permute.xlu0 %1516
        %1536 = vrot.lane.b32.xlu0 %v1307, 12
        %v1537 = vpop.permute.xlu0 %1536
        %1538 = vrot.lane.b32.xlu0 %v1308, 12
        %v1539 = vpop.permute.xlu0 %1538
        %1540 = vrot.lane.b32.xlu0 %v1310, 12
        %v1541 = vpop.permute.xlu0 %1540
        %1542 = vrot.lane.b32.xlu0 %v1311, 12
        %v1543 = vpop.permute.xlu0 %1542
        %1544 = vrot.lane.b32.xlu0 %v1313, 12
        %v1545 = vpop.permute.xlu0 %1544
        %1546 = vrot.lane.b32.xlu0 %v1314, 12
        %v1547 = vpop.permute.xlu0 %1546
        %1548 = vrot.lane.b32.xlu0 %v1316, 12
        %v1549 = vpop.permute.xlu0 %1548
        %1550 = vrot.lane.b32.xlu0 %v1317, 12
        %v1551 = vpop.permute.xlu0 %1550
        %1552 = vrot.lane.b32.xlu0 %v1319, 12
        %v1553 = vpop.permute.xlu0 %1552
        %1554 = vrot.lane.b32.xlu0 %v1320, 12
        %v1555 = vpop.permute.xlu0 %1554
        %1556 = vrot.lane.b32.xlu0 %v1322, 12
        %v1557 = vpop.permute.xlu0 %1556
        %1558 = vrot.lane.b32.xlu0 %v1323, 12
        %v1559 = vpop.permute.xlu0 %1558
        %1560 = vrot.lane.b32.xlu0 %v1325, 12
        %v1561 = vpop.permute.xlu0 %1560
        %1562 = vrot.lane.b32.xlu0 %v1326, 12
        %v1563 = vpop.permute.xlu0 %1562
        %1564 = vrot.lane.b32.xlu0 %v1328, 12
        %v1565 = vpop.permute.xlu0 %1564
        %1566 = vrot.lane.b32.xlu0 %v1329, 12
        %v1567 = vpop.permute.xlu0 %1566
        %v1585 = vrot.slane %v1328, 1
        %v1586 = vrot.slane %v1329, 1
        %v1587 = vsel %vm505, %v1585, %v1586
        %v1588 = vrot.slane %v1330, 1
        %v1589 = vsel %vm505, %v1586, %v1588
        %1590 = vrot.lane.b32.xlu0 %v1365, 16
        %v1591 = vpop.permute.xlu0 %1590
        %1592 = vrot.lane.b32.xlu0 %v1367, 16
        %v1593 = vpop.permute.xlu0 %1592
        %1594 = vrot.lane.b32.xlu0 %v1370, 16
        %v1595 = vpop.permute.xlu0 %1594
        %1596 = vrot.lane.b32.xlu0 %v1372, 16
        %v1597 = vpop.permute.xlu0 %1596
        %1598 = vrot.lane.b32.xlu0 %v1375, 16
        %v1599 = vpop.permute.xlu0 %1598
        %1600 = vrot.lane.b32.xlu0 %v1377, 16
        %v1601 = vpop.permute.xlu0 %1600
        %1602 = vrot.lane.b32.xlu0 %v1380, 16
        %v1603 = vpop.permute.xlu0 %1602
        %1604 = vrot.lane.b32.xlu0 %v1382, 16
        %v1605 = vpop.permute.xlu0 %1604
        %1606 = vrot.lane.b32.xlu0 %v1385, 16
        %v1607 = vpop.permute.xlu0 %1606
        %1608 = vrot.lane.b32.xlu0 %v1387, 16
        %v1609 = vpop.permute.xlu0 %1608
        %1610 = vrot.lane.b32.xlu0 %v1390, 16
        %v1611 = vpop.permute.xlu0 %1610
        %1612 = vrot.lane.b32.xlu0 %v1392, 16
        %v1613 = vpop.permute.xlu0 %1612
        %1614 = vrot.lane.b32.xlu0 %v1395, 16
        %v1615 = vpop.permute.xlu0 %1614
        %1616 = vrot.lane.b32.xlu0 %v1397, 16
        %v1617 = vpop.permute.xlu0 %1616
        %1618 = vrot.lane.b32.xlu0 %v1587, 16
        %v1619 = vpop.permute.xlu0 %1618
        %1620 = vrot.lane.b32.xlu0 %v1589, 16
        %v1621 = vpop.permute.xlu0 %1620
        %v1638 = vrot.slane %v1328, 2
        %v1639 = vrot.slane %v1329, 2
        %v1640 = vsel %vm594, %v1638, %v1639
        %v1641 = vrot.slane %v1330, 2
        %v1642 = vsel %vm594, %v1639, %v1641
        %1643 = vrot.lane.b32.xlu0 %v1453, 20
        %v1644 = vpop.permute.xlu0 %1643
        %1645 = vrot.lane.b32.xlu0 %v1455, 20
        %v1646 = vpop.permute.xlu0 %1645
        %1647 = vrot.lane.b32.xlu0 %v1458, 20
        %v1648 = vpop.permute.xlu0 %1647
        %1649 = vrot.lane.b32.xlu0 %v1460, 20
        %v1650 = vpop.permute.xlu0 %1649
        %1651 = vrot.lane.b32.xlu0 %v1463, 20
        %v1652 = vpop.permute.xlu0 %1651
        %1653 = vrot.lane.b32.xlu0 %v1465, 20
        %v1654 = vpop.permute.xlu0 %1653
        %1655 = vrot.lane.b32.xlu0 %v1468, 20
        %v1656 = vpop.permute.xlu0 %1655
        %1657 = vrot.lane.b32.xlu0 %v1470, 20
        %v1658 = vpop.permute.xlu0 %1657
        %1659 = vrot.lane.b32.xlu0 %v1473, 20
        %v1660 = vpop.permute.xlu0 %1659
        %1661 = vrot.lane.b32.xlu0 %v1475, 20
        %v1662 = vpop.permute.xlu0 %1661
        %1663 = vrot.lane.b32.xlu0 %v1478, 20
        %v1664 = vpop.permute.xlu0 %1663
        %1665 = vrot.lane.b32.xlu0 %v1480, 20
        %v1666 = vpop.permute.xlu0 %1665
        %1667 = vrot.lane.b32.xlu0 %v1483, 20
        %v1668 = vpop.permute.xlu0 %1667
        %1669 = vrot.lane.b32.xlu0 %v1485, 20
        %v1670 = vpop.permute.xlu0 %1669
        %1671 = vrot.lane.b32.xlu0 %v1640, 20
        %v1672 = vpop.permute.xlu0 %1671
        %1673 = vrot.lane.b32.xlu0 %v1642, 20
        %v1674 = vpop.permute.xlu0 %1673
        %1693 = vrot.lane.b32.xlu0 %v1310, 24
        %v1694 = vpop.permute.xlu0 %1693
        %1695 = vrot.lane.b32.xlu0 %v1311, 24
        %v1696 = vpop.permute.xlu0 %1695
        %1697 = vrot.lane.b32.xlu0 %v1313, 24
        %v1698 = vpop.permute.xlu0 %1697
        %1699 = vrot.lane.b32.xlu0 %v1314, 24
        %v1700 = vpop.permute.xlu0 %1699
        %1701 = vrot.lane.b32.xlu0 %v1316, 24
        %v1702 = vpop.permute.xlu0 %1701
        %1703 = vrot.lane.b32.xlu0 %v1317, 24
        %v1704 = vpop.permute.xlu0 %1703
        %1705 = vrot.lane.b32.xlu0 %v1319, 24
        %v1706 = vpop.permute.xlu0 %1705
        %1707 = vrot.lane.b32.xlu0 %v1320, 24
        %v1708 = vpop.permute.xlu0 %1707
        %1709 = vrot.lane.b32.xlu0 %v1322, 24
        %v1710 = vpop.permute.xlu0 %1709
        %1711 = vrot.lane.b32.xlu0 %v1323, 24
        %v1712 = vpop.permute.xlu0 %1711
        %1713 = vrot.lane.b32.xlu0 %v1325, 24
        %v1714 = vpop.permute.xlu0 %1713
        %1715 = vrot.lane.b32.xlu0 %v1326, 24
        %v1716 = vpop.permute.xlu0 %1715
        %1717 = vrot.lane.b32.xlu0 %v1328, 24
        %v1718 = vpop.permute.xlu0 %1717
        %1719 = vrot.lane.b32.xlu0 %v1329, 24
        %v1720 = vpop.permute.xlu0 %1719
        %1721 = vrot.lane.b32.xlu0 %v1331, 24
        %v1722 = vpop.permute.xlu0 %1721
        %1723 = vrot.lane.b32.xlu0 %v1332, 24
        %v1724 = vpop.permute.xlu0 %1723
        %v1742 = vrot.slane %v1331, 1
        %v1743 = vrot.slane %v1332, 1
        %v1744 = vsel %vm505, %v1742, %v1743
        %v1745 = vrot.slane %v1333, 1
        %v1746 = vsel %vm505, %v1743, %v1745
        %1747 = vrot.lane.b32.xlu0 %v1370, 28
        %v1748 = vpop.permute.xlu0 %1747
        %1749 = vrot.lane.b32.xlu0 %v1372, 28
        %v1750 = vpop.permute.xlu0 %1749
        %1751 = vrot.lane.b32.xlu0 %v1375, 28
        %v1752 = vpop.permute.xlu0 %1751
        %1753 = vrot.lane.b32.xlu0 %v1377, 28
        %v1754 = vpop.permute.xlu0 %1753
        %1755 = vrot.lane.b32.xlu0 %v1380, 28
        %v1756 = vpop.permute.xlu0 %1755
        %1757 = vrot.lane.b32.xlu0 %v1382, 28
        %v1758 = vpop.permute.xlu0 %1757
        %1759 = vrot.lane.b32.xlu0 %v1385, 28
        %v1760 = vpop.permute.xlu0 %1759
        %1761 = vrot.lane.b32.xlu0 %v1387, 28
        %v1762 = vpop.permute.xlu0 %1761
        %1763 = vrot.lane.b32.xlu0 %v1390, 28
        %v1764 = vpop.permute.xlu0 %1763
        %1765 = vrot.lane.b32.xlu0 %v1392, 28
        %v1766 = vpop.permute.xlu0 %1765
        %1767 = vrot.lane.b32.xlu0 %v1395, 28
        %v1768 = vpop.permute.xlu0 %1767
        %1769 = vrot.lane.b32.xlu0 %v1397, 28
        %v1770 = vpop.permute.xlu0 %1769
        %1771 = vrot.lane.b32.xlu0 %v1587, 28
        %v1772 = vpop.permute.xlu0 %1771
        %1773 = vrot.lane.b32.xlu0 %v1589, 28
        %v1774 = vpop.permute.xlu0 %1773
        %1775 = vrot.lane.b32.xlu0 %v1744, 28
        %v1776 = vpop.permute.xlu0 %1775
        %1777 = vrot.lane.b32.xlu0 %v1746, 28
        %v1778 = vpop.permute.xlu0 %1777
        %v1795 = vrot.slane %v1331, 2
        %v1796 = vrot.slane %v1332, 2
        %v1797 = vsel %vm594, %v1795, %v1796
        %v1798 = vrot.slane %v1333, 2
        %v1799 = vsel %vm594, %v1796, %v1798
        %1800 = vrot.lane.b32.xlu0 %v1458, 32
        %v1801 = vpop.permute.xlu0 %1800
        %1802 = vrot.lane.b32.xlu0 %v1460, 32
        %v1803 = vpop.permute.xlu0 %1802
        %1804 = vrot.lane.b32.xlu0 %v1463, 32
        %v1805 = vpop.permute.xlu0 %1804
        %1806 = vrot.lane.b32.xlu0 %v1465, 32
        %v1807 = vpop.permute.xlu0 %1806
        %1808 = vrot.lane.b32.xlu0 %v1468, 32
        %v1809 = vpop.permute.xlu0 %1808
        %1810 = vrot.lane.b32.xlu0 %v1470, 32
        %v1811 = vpop.permute.xlu0 %1810
        %1812 = vrot.lane.b32.xlu0 %v1473, 32
        %v1813 = vpop.permute.xlu0 %1812
        %1814 = vrot.lane.b32.xlu0 %v1475, 32
        %v1815 = vpop.permute.xlu0 %1814
        %1816 = vrot.lane.b32.xlu0 %v1478, 32
        %v1817 = vpop.permute.xlu0 %1816
        %1818 = vrot.lane.b32.xlu0 %v1480, 32
        %v1819 = vpop.permute.xlu0 %1818
        %1820 = vrot.lane.b32.xlu0 %v1483, 32
        %v1821 = vpop.permute.xlu0 %1820
        %1822 = vrot.lane.b32.xlu0 %v1485, 32
        %v1823 = vpop.permute.xlu0 %1822
        %1824 = vrot.lane.b32.xlu0 %v1640, 32
        %v1825 = vpop.permute.xlu0 %1824
        %1826 = vrot.lane.b32.xlu0 %v1642, 32
        %v1827 = vpop.permute.xlu0 %1826
        %1828 = vrot.lane.b32.xlu0 %v1797, 32
        %v1829 = vpop.permute.xlu0 %1828
        %1830 = vrot.lane.b32.xlu0 %v1799, 32
        %v1831 = vpop.permute.xlu0 %1830
        %v1848 = vsel %vm366, %v1304, %v1399
        %v1849 = vsel %vm366, %v1305, %v1401
        %v1850 = vsel %vm366, %v1307, %v1403
        %v1851 = vsel %vm366, %v1308, %v1405
        %v1852 = vsel %vm366, %v1310, %v1407
        %v1853 = vsel %vm366, %v1311, %v1409
        %v1854 = vsel %vm366, %v1313, %v1411
        %v1855 = vsel %vm366, %v1314, %v1413
        %v1856 = vsel %vm366, %v1316, %v1415
        %v1857 = vsel %vm366, %v1317, %v1417
        %v1858 = vsel %vm366, %v1319, %v1419
        %v1859 = vsel %vm366, %v1320, %v1421
        %v1860 = vsel %vm366, %v1322, %v1423
        %v1861 = vsel %vm366, %v1323, %v1425
        %v1862 = vsel %vm366, %v1325, %v1427
        %v1863 = vsel %vm366, %v1326, %v1429
        %v1864 = vsel %vm1013, %v1848, %v1487
        %v1865 = vsel %vm1013, %v1849, %v1489
        %v1866 = vsel %vm1013, %v1850, %v1491
        %v1867 = vsel %vm1013, %v1851, %v1493
        %v1868 = vsel %vm1013, %v1852, %v1495
        %v1869 = vsel %vm1013, %v1853, %v1497
        %v1870 = vsel %vm1013, %v1854, %v1499
        %v1871 = vsel %vm1013, %v1855, %v1501
        %v1872 = vsel %vm1013, %v1856, %v1503
        %v1873 = vsel %vm1013, %v1857, %v1505
        %v1874 = vsel %vm1013, %v1858, %v1507
        %v1875 = vsel %vm1013, %v1859, %v1509
        %v1876 = vsel %vm1013, %v1860, %v1511
        %v1877 = vsel %vm1013, %v1861, %v1513
        %v1878 = vsel %vm1013, %v1862, %v1515
        %v1879 = vsel %vm1013, %v1863, %v1517
        %v1880 = vsel %vm1030, %v1864, %v1537
        %v1881 = vsel %vm1030, %v1865, %v1539
        %v1882 = vsel %vm1030, %v1866, %v1541
        %v1883 = vsel %vm1030, %v1867, %v1543
        %v1884 = vsel %vm1030, %v1868, %v1545
        %v1885 = vsel %vm1030, %v1869, %v1547
        %v1886 = vsel %vm1030, %v1870, %v1549
        %v1887 = vsel %vm1030, %v1871, %v1551
        %v1888 = vsel %vm1030, %v1872, %v1553
        %v1889 = vsel %vm1030, %v1873, %v1555
        %v1890 = vsel %vm1030, %v1874, %v1557
        %v1891 = vsel %vm1030, %v1875, %v1559
        %v1892 = vsel %vm1030, %v1876, %v1561
        %v1893 = vsel %vm1030, %v1877, %v1563
        %v1894 = vsel %vm1030, %v1878, %v1565
        %v1895 = vsel %vm1030, %v1879, %v1567
        %v1896 = vsel %vm1047, %v1880, %v1591
        %v1897 = vsel %vm1047, %v1881, %v1593
        %v1898 = vsel %vm1047, %v1882, %v1595
        %v1899 = vsel %vm1047, %v1883, %v1597
        %v1900 = vsel %vm1047, %v1884, %v1599
        %v1901 = vsel %vm1047, %v1885, %v1601
        %v1902 = vsel %vm1047, %v1886, %v1603
        %v1903 = vsel %vm1047, %v1887, %v1605
        %v1904 = vsel %vm1047, %v1888, %v1607
        %v1905 = vsel %vm1047, %v1889, %v1609
        %v1906 = vsel %vm1047, %v1890, %v1611
        %v1907 = vsel %vm1047, %v1891, %v1613
        %v1908 = vsel %vm1047, %v1892, %v1615
        %v1909 = vsel %vm1047, %v1893, %v1617
        %v1910 = vsel %vm1047, %v1894, %v1619
        %v1911 = vsel %vm1047, %v1895, %v1621
        %v1912 = vsel %vm1064, %v1896, %v1644
        %v1913 = vsel %vm1064, %v1897, %v1646
        %v1914 = vsel %vm1064, %v1898, %v1648
        %v1915 = vsel %vm1064, %v1899, %v1650
        %v1916 = vsel %vm1064, %v1900, %v1652
        %v1917 = vsel %vm1064, %v1901, %v1654
        %v1918 = vsel %vm1064, %v1902, %v1656
        %v1919 = vsel %vm1064, %v1903, %v1658
        %v1920 = vsel %vm1064, %v1904, %v1660
        %v1921 = vsel %vm1064, %v1905, %v1662
        %v1922 = vsel %vm1064, %v1906, %v1664
        %v1923 = vsel %vm1064, %v1907, %v1666
        %v1924 = vsel %vm1064, %v1908, %v1668
        %v1925 = vsel %vm1064, %v1909, %v1670
        %v1926 = vsel %vm1064, %v1910, %v1672
        %v1927 = vsel %vm1064, %v1911, %v1674
        %v1928 = vsel %vm1081, %v1912, %v1694
        %v1929 = vsel %vm1081, %v1913, %v1696
        %v1930 = vsel %vm1081, %v1914, %v1698
        %v1931 = vsel %vm1081, %v1915, %v1700
        %v1932 = vsel %vm1081, %v1916, %v1702
        %v1933 = vsel %vm1081, %v1917, %v1704
        %v1934 = vsel %vm1081, %v1918, %v1706
        %v1935 = vsel %vm1081, %v1919, %v1708
        %v1936 = vsel %vm1081, %v1920, %v1710
        %v1937 = vsel %vm1081, %v1921, %v1712
        %v1938 = vsel %vm1081, %v1922, %v1714
        %v1939 = vsel %vm1081, %v1923, %v1716
        %v1940 = vsel %vm1081, %v1924, %v1718
        %v1941 = vsel %vm1081, %v1925, %v1720
        %v1942 = vsel %vm1081, %v1926, %v1722
        %v1943 = vsel %vm1081, %v1927, %v1724
        %v1944 = vsel %vm1098, %v1928, %v1748
        %v1945 = vsel %vm1098, %v1929, %v1750
        %v1946 = vsel %vm1098, %v1930, %v1752
        %v1947 = vsel %vm1098, %v1931, %v1754
        %v1948 = vsel %vm1098, %v1932, %v1756
        %v1949 = vsel %vm1098, %v1933, %v1758
        %v1950 = vsel %vm1098, %v1934, %v1760
        %v1951 = vsel %vm1098, %v1935, %v1762
        %v1952 = vsel %vm1098, %v1936, %v1764
        %v1953 = vsel %vm1098, %v1937, %v1766
        %v1954 = vsel %vm1098, %v1938, %v1768
        %v1955 = vsel %vm1098, %v1939, %v1770
        %v1956 = vsel %vm1098, %v1940, %v1772
        %v1957 = vsel %vm1098, %v1941, %v1774
        %v1958 = vsel %vm1098, %v1942, %v1776
        %v1959 = vsel %vm1098, %v1943, %v1778
        %v1960 = vsel %vm1115, %v1944, %v1801
        %v1961 = vsel %vm1115, %v1945, %v1803
        %v1962 = vsel %vm1115, %v1946, %v1805
        %v1963 = vsel %vm1115, %v1947, %v1807
        %v1964 = vsel %vm1115, %v1948, %v1809
        %v1965 = vsel %vm1115, %v1949, %v1811
        %v1966 = vsel %vm1115, %v1950, %v1813
        %v1967 = vsel %vm1115, %v1951, %v1815
        %v1968 = vsel %vm1115, %v1952, %v1817
        %v1969 = vsel %vm1115, %v1953, %v1819
        %v1970 = vsel %vm1115, %v1954, %v1821
        %v1971 = vsel %vm1115, %v1955, %v1823
        %v1972 = vsel %vm1115, %v1956, %v1825
        %v1973 = vsel %vm1115, %v1957, %v1827
        %v1974 = vsel %vm1115, %v1958, %v1829
        %v1975 = vsel %vm1115, %v1959, %v1831
        %v1976 = vpack.c.bf16 %v1961, %v1960
        %v1977 = vpack.c.bf16 %v1963, %v1962
        %v1978 = vpack.c.bf16 %v1965, %v1964
        %v1979 = vpack.c.bf16 %v1967, %v1966
        %v1980 = vpack.c.bf16 %v1969, %v1968
        %v1981 = vpack.c.bf16 %v1971, %v1970
        %v1982 = vpack.c.bf16 %v1973, %v1972
        %v1983 = vpack.c.bf16 %v1975, %v1974
        %v1985 = vsel %vm1161, %v1976, 0
        %v1988 = vsel %vm1161, %v1977, 0
        %v1991 = vsel %vm1161, %v1978, 0
        %v1994 = vsel %vm1161, %v1979, 0
        %v1997 = vsel %vm1161, %v1980, 0
        %v2000 = vsel %vm1161, %v1981, 0
        %v2003 = vsel %vm1161, %v1982, 0
        %v2006 = vsel %vm1161, %v1983, 0
        %2008 = vmatprep.subr.bf16.mxu0 0
        %2009 = vmatpush1.bf16.msra.mxu0 %v1156
        %2010 = vmatprep.subr.bf16.mxu0 0
        %2011 = vmatpush1.bf16.msra.mxu0 %v1157
        %2012 = vmatprep.subr.bf16.mxu0 0
        %2013 = vmatpush1.bf16.msra.mxu0 %v1188
        %2014 = vmatprep.subr.bf16.mxu0 0
        %2015 = vmatpush1.bf16.msra.mxu0 0
        %2016 = vmatprep.subr.bf16.mxu0 0
        %2017 = vmatpush1.bf16.msra.mxu0 0
        %2018 = vmatprep.subr.bf16.mxu0 0
        %2019 = vmatpush1.bf16.msra.mxu0 0
        %2020 = vmatprep.subr.bf16.mxu0 0
        %2021 = vmatpush1.bf16.msra.mxu0 0
        %2022 = vmatprep.subr.bf16.mxu0 0
        %2023 = vmatpush1.bf16.msra.mxu0 0
        %2024 = vmatprep.subr.bf16.mxu0 0
        %2025 = vmatpush1.bf16.msra.mxu0 0
        %2026 = vmatprep.subr.bf16.mxu0 0
        %2027 = vmatpush1.bf16.msra.mxu0 0
        %2028 = vmatprep.subr.bf16.mxu0 0
        %2029 = vmatpush1.bf16.msra.mxu0 0
        %2030 = vmatprep.subr.bf16.mxu0 0
        %2031 = vmatpush1.bf16.msra.mxu0 0
        %2032 = vmatprep.subr.bf16.mxu0 0
        %2033 = vmatpush1.bf16.msra.mxu0 0
        %2034 = vmatprep.subr.bf16.mxu0 0
        %2035 = vmatpush1.bf16.msra.mxu0 0
        %2036 = vmatprep.subr.bf16.mxu0 0
        %2037 = vmatpush1.bf16.msra.mxu0 0
        %2038 = vmatprep.subr.bf16.mxu0 0
        %2039 = vmatpush1.bf16.msra.mxu0 0
        %2040 = vmatprep.mubr.bf16.mxu0 0
        %2041 = vmatmul.mubr.bf16.gmra.mrb[0].mxu0 %v1985
        %v2042 = vpop.f32.mrb[0].mxu0
        %v2043 = vadd.f32 %v1144, %v2042
        %v2044 = vpop.f32.mrb[0].mxu0
        %v2045 = vpop.f32.mrb[0].mxu0
        %v2046 = vadd.f32 %v1144, %v2045
        %v2047 = vpop.f32.mrb[0].mxu0
        %2048 = vmatprep.mubr.bf16.mxu0 0
        %2049 = vmatmul.mubr.bf16.gmra.mrb[0].mxu0 %v1988
        %v2050 = vpop.f32.mrb[0].mxu0
        %v2051 = vadd.f32 %v1144, %v2050
        %v2052 = vpop.f32.mrb[0].mxu0
        %v2053 = vpop.f32.mrb[0].mxu0
        %v2054 = vadd.f32 %v1144, %v2053
        %v2055 = vpop.f32.mrb[0].mxu0
        %2056 = vmatprep.mubr.bf16.mxu0 0
        %2057 = vmatmul.mubr.bf16.gmra.mrb[0].mxu0 %v1991
        %v2058 = vpop.f32.mrb[0].mxu0
        %v2059 = vadd.f32 %v1144, %v2058
        %v2060 = vpop.f32.mrb[0].mxu0
        %v2061 = vpop.f32.mrb[0].mxu0
        %v2062 = vadd.f32 %v1144, %v2061
        %v2063 = vpop.f32.mrb[0].mxu0
        %2064 = vmatprep.mubr.bf16.mxu0 0
        %2065 = vmatmul.mubr.bf16.gmra.mrb[0].mxu0 %v1994
        %v2066 = vpop.f32.mrb[0].mxu0
        %v2067 = vadd.f32 %v1144, %v2066
        %v2068 = vpop.f32.mrb[0].mxu0
        %v2069 = vpop.f32.mrb[0].mxu0
        %v2070 = vadd.f32 %v1144, %v2069
        %v2071 = vpop.f32.mrb[0].mxu0
        %2072 = vmatprep.mubr.bf16.mxu0 0
        %2073 = vmatmul.mubr.bf16.gmra.mrb[0].mxu0 %v1997
        %v2074 = vpop.f32.mrb[0].mxu0
        %v2075 = vadd.f32 %v1144, %v2074
        %v2076 = vpop.f32.mrb[0].mxu0
        %v2077 = vpop.f32.mrb[0].mxu0
        %v2078 = vadd.f32 %v1144, %v2077
        %v2079 = vpop.f32.mrb[0].mxu0
        %2080 = vmatprep.mubr.bf16.mxu0 0
        %2081 = vmatmul.mubr.bf16.gmra.mrb[0].mxu0 %v2000
        %v2082 = vpop.f32.mrb[0].mxu0
        %v2083 = vadd.f32 %v1144, %v2082
        %v2084 = vpop.f32.mrb[0].mxu0
        %v2085 = vpop.f32.mrb[0].mxu0
        %v2086 = vadd.f32 %v1144, %v2085
        %v2087 = vpop.f32.mrb[0].mxu0
        %2088 = vmatprep.mubr.bf16.mxu0 0
        %2089 = vmatmul.mubr.bf16.gmra.mrb[0].mxu0 %v2003
        %v2090 = vpop.f32.mrb[0].mxu0
        %v2091 = vadd.f32 %v1144, %v2090
        %v2092 = vpop.f32.mrb[0].mxu0
        %v2093 = vpop.f32.mrb[0].mxu0
        %v2094 = vadd.f32 %v1144, %v2093
        %v2095 = vpop.f32.mrb[0].mxu0
        %2096 = vmatprep.mubr.bf16.mxu0 0
        %2097 = vmatmul.mubr.bf16.gmra.mrb[0].mxu0 %v2006
        %v2098 = vpop.f32.mrb[0].mxu0
        %v2099 = vadd.f32 %v1144, %v2098
        %v2100 = vpop.f32.mrb[0].mxu0
        %v2101 = vpop.f32.mrb[0].mxu0
        %v2102 = vadd.f32 %v1144, %v2101
        %v2103 = vpop.f32.mrb[0].mxu0
        %2104 = vdwg.mxu0
        %s2105 = scalar_lea.vmem %s217, 128 [#allocation3]
        %2106 = vst [vmem:[%s2105] sm:$0xff] %v2043
        %2107 = vst [vmem:[%s2105 + $0x8] sm:$0xff] %v2046
        %2108 = vst [vmem:[%s2105 + $0x10] sm:$0xff] %v2051
        %2109 = vst [vmem:[%s2105 + $0x18] sm:$0xff] %v2054
        %2110 = vst [vmem:[%s2105 + $0x20] sm:$0xff] %v2059
        %2111 = vst [vmem:[%s2105 + $0x28] sm:$0xff] %v2062
        %2112 = vst [vmem:[%s2105 + $0x30] sm:$0xff] %v2067
        %2113 = vst [vmem:[%s2105 + $0x38] sm:$0xff] %v2070
        %2114 = vst [vmem:[%s2105 + $0x40] sm:$0xff] %v2075
        %2115 = vst [vmem:[%s2105 + $0x48] sm:$0xff] %v2078
        %2116 = vst [vmem:[%s2105 + $0x50] sm:$0xff] %v2083
        %2117 = vst [vmem:[%s2105 + $0x58] sm:$0xff] %v2086
        %2118 = vst [vmem:[%s2105 + $0x60] sm:$0xff] %v2091
        %2119 = vst [vmem:[%s2105 + $0x68] sm:$0xff] %v2094
        %2120 = vst [vmem:[%s2105 + $0x70] sm:$0xff] %v2099
        %2121 = vst [vmem:[%s2105 + $0x78] sm:$0xff] %v2102
        %s2122 = sand.u32 %s137, 1
        %s2123 = scalar_lea.sflag [#allocation4], %s2122
        %s2124 = sand.u32 %s137, 1
        %s2125 = smul.addr %s2124, 256
        %s2126 = scalar_lea.vmem [#allocation3], %s2125
        // Predicated region
        $region41: #{tpu_custom_call.1} parent=39 // pred_check
          %p2127 = pneg %p147
        $region42: #{tpu_custom_call.1} parent=39 // pred_check_branch
          %2129 = sbr.rel (%p2127) target = $region44
        $region43: #{tpu_custom_call.1} parent=39 // pred_region
          %s2131 = ssub.s32 4096, 4096
          %2132 = vsyncadd %s2123, %s2131
          %s2133 = smul.addr %s19, 32
          %s2134 = smul.addr %s2133, 128
          %s2135 = scalar_lea.hbm %s5, %s2134
          %s2136 = sshll.u32 %s2126, 4
          %s2137 = int_to_ptr.vmem [resolvable:$true] %s2136
          %2142 = dma.vmem_to_hbm [thread:$0]  %s2137, 4096, %s2135, %s2123, 128, 128, 8
        $region44: #{tpu_custom_call.1} parent=39 // pred_fallthru
          _
      $region40: #{tpu_custom_call.1} parent=5 // pred_fallthru
        _
      %p2143 = scmp.le.s32.totalorder 2, %s14
      // Predicated region
      $region45: #{tpu_custom_call.1} parent=5 // pred_check
        %p2144 = pneg %p2143
      $region46: #{tpu_custom_call.1} parent=5 // pred_check_branch
        %2146 = sbr.rel (%p2144) target = $region48
      $region47: #{tpu_custom_call.1} parent=5 // pred_region
        %s2147 = ssub.s32 %s14, 2
        // Predicated region
        $region49: #{tpu_custom_call.1} parent=47 // pred_check
          %p2148 = pneg %p153
        $region50: #{tpu_custom_call.1} parent=47 // pred_check_branch
          %2150 = sbr.rel (%p2148) target = $region52
        $region51: #{tpu_custom_call.1} parent=47 // pred_region
          %s2151 = sand.u32 %s138, 1
          %s2152 = scalar_lea.sflag [#allocation4], %s2151
          %s2153 = sand.u32 %s138, 1
          %s2154 = smul.addr %s2153, 256
          %s2155 = scalar_lea.vmem [#allocation3], %s2154
          %2156 = dma.done %s2152, 4096
        $region52: #{tpu_custom_call.1} parent=47 // pred_fallthru
          _
      $region48: #{tpu_custom_call.1} parent=5 // pred_fallthru
        _
    $region6: #{tpu_custom_call.1} parent=1 // loop_footer
      %s18 = sadd.s32 1, %s14
    $region7: #{tpu_custom_call.1} parent=1 // loop_footer_branch
      %13 = sbr.rel target = $region3
    $region8: #{tpu_custom_call.1} parent=1 // loop_exit
      _
    %2157 = vsyncpa [#allocation4], 1
    %s2158 = scalar_lea.sflag [#allocation4], 1
    %2159 = vsyncpa %s2158, 1

</llo_original>
